<compile_context>
chip_gen: v7x
topology: tpu7x:2x2x1
jax: 0.10.0
libtpu: 0.0.40
codegen_flags: <defaults>
</compile_context>

<pallas_src>
import jax
import jax.numpy as jnp
from jax.experimental import pallas as pl
from jax.experimental.pallas import tpu as pltpu

# ---------------- model constants (synthetic small SMPL-X) -----------------
NUM_BODY_JOINTS = 21
NUM_HAND_JOINTS = 15
NUM_FACE_JOINTS = 3
NUM_JOINTS = NUM_BODY_JOINTS + 2 * NUM_HAND_JOINTS + NUM_FACE_JOINTS   # 54
NUM_TOTAL_JOINTS = NUM_JOINTS + 1                                      # 55 (w/ root)
NUM_BETAS = 10
NUM_EXPR = 10
POSE_BASIS = NUM_JOINTS * 9                                            # 486

KRAW = NUM_BETAS + NUM_EXPR + POSE_BASIS + 1   # 507 = [betas | expr | pose | bias]
KPAD = 512                                     # padded contraction dim (bf16 packs 16/sublane)
JPAD = 64                                      # padded joint dim (55 -> 64)

V = 512         # synthetic vertex count (real SMPL-X: 10475 -> zero-pad)
F = 256         # synthetic face count
L = 8           # synthetic landmark count
N_EXTRA = 21    # VertexJointSelector extra joints

# Vertex-tile cap (multiple of 128).  At real SMPL-X scale raise toward
# 512-1024 and re-budget against v7x 64 MiB physical / 32 MiB default scoped
# VMEM; keep >=4 (preferably even) tiles so both v7x TensorCores stay busy.
TV_CAP = 512
MIN_TILES = 4


def _cdiv(a, b):
    return -(-a // b)


def _choose_tile(total, cap=TV_CAP, min_tiles=MIN_TILES):
    """Largest multiple of 128 <= cap that still yields >= min_tiles tiles."""
    tv = max(128, (cap // 128) * 128)
    while tv > 128 and _cdiv(total, tv) < min_tiles:
        tv -= 128
    return tv


# ======================= fused blend + skin Pallas kernel ===================

def _lbs_kernel(s_ref, w3_ref, wT_ref, a2_ref, out_ref):
    # s_ref : (B, KPAD)      bf16  [betas | expr | pose_feature | 1 | 0-pad]
    # w3_ref: (3, KPAD, TV)  bf16  per-coord [shapedirs; posedirs; v_template; 0]
    # wT_ref: (JPAD, TV)     f32   lbs_weights^T tile (padded joints / verts are 0)
    # a2_ref: (12*B, JPAD)   f32   rel transforms, row = (m*3 + c)*B + b
    # out   : (3, B, TV)     f32   skinned vertices, coordinate-major
    B = out_ref.shape[1]
    s = s_ref[...]

    # K1: blend shapes + pose correctives + template (bias row), per coordinate.
    p = [jnp.dot(s, w3_ref[c], preferred_element_type=jnp.float32)
         for c in range(3)]                                          # 3 x (B, TV)

    # K3: lbs-weighted per-vertex affine entries: M = A2 @ W^T -> (12B, TV)
    m = jnp.dot(a2_ref[...], wT_ref[...], preferred_element_type=jnp.float32)

    for c in range(3):                                               # static, 3 iters
        rx = m[(0 * 3 + c) * B:(0 * 3 + c + 1) * B]                  # (B, TV)
        ry = m[(1 * 3 + c) * B:(1 * 3 + c + 1) * B]
        rz = m[(2 * 3 + c) * B:(2 * 3 + c + 1) * B]
        tr = m[(3 * 3 + c) * B:(3 * 3 + c + 1) * B]
        out_ref[c] = rx * p[0] + ry * p[1] + rz * p[2] + tr


def lbs_pallas(S, W3, W_T, A2, tv):
    B = S.shape[0]
    Vp = W3.shape[2]
    nt = Vp // tv
    return pl.pallas_call(
        _lbs_kernel,
        grid=(nt,),
        in_specs=[
            pl.BlockSpec((B, KPAD), lambda t: (0, 0)),           # activations, resident
            pl.BlockSpec((3, KPAD, tv), lambda t: (0, 0, t)),    # blend weights, stream once
            pl.BlockSpec((JPAD, tv), lambda t: (0, t)),          # lbs weights^T tile
            pl.BlockSpec((12 * B, JPAD), lambda t: (0, 0)),      # rel transforms, resident
        ],
        out_specs=pl.BlockSpec((3, B, tv), lambda t: (0, 0, t)),
        out_shape=jax.ShapeDtypeStruct((3, B, Vp), jnp.float32),
        compiler_params=pltpu.CompilerParams(
            dimension_semantics=("parallel",),
            vmem_limit_bytes=48 * 1024 * 1024),
    )(S, W3, W_T, A2)


# =========================== plain-JAX reference ops ========================

def lbs_reference(params, shape_components, pose_feature):
    sd_full = jnp.concatenate([params['shapedirs'], params['expr_dirs']],
                              axis=-1)                                   # (V,3,20)
    v_shaped = params['v_template'][None] + jnp.einsum(
        'bk,vck->bvc', shape_components, sd_full)
    J = jnp.einsum('jv,bvc->bjc', params['J_regressor'], v_shaped)
    pose_off = jnp.einsum('bp,pn->bn', pose_feature,
                          params['posedirs']).reshape(v_shaped.shape)
    v_posed = v_shaped + pose_off
    return v_posed, J


def skin_ref(v_posed, W, A_col):
    M = jnp.einsum('vj,bjk->bvk', W, A_col)               # (B, V, 12)
    x = v_posed[..., 0:1]
    y = v_posed[..., 1:2]
    z = v_posed[..., 2:3]
    return M[..., 0:3] * x + M[..., 3:6] * y + M[..., 6:9] * z + M[..., 9:12]


# =============================== SMPLX glue =================================

def batch_rigid_transform(rot_mats, joints, parents):
    # rot_mats: (B, J, 3, 3); joints: (B, J, 3); parents: python tuple (static)
    B, Jn = joints.shape[:2]
    parents_arr = jnp.asarray(parents, dtype=jnp.int32)
    rel_joints = joints.at[:, 1:].add(-joints[:, parents_arr[1:]])
    tm = jnp.zeros((B, Jn, 4, 4), joints.dtype)
    tm = tm.at[:, :, :3, :3].set(rot_mats)
    tm = tm.at[:, :, :3, 3].set(rel_joints)
    tm = tm.at[:, :, 3, 3].set(1.0)
    chain = [tm[:, 0]]
    for i in range(1, Jn):
        chain.append(jnp.matmul(chain[parents[i]], tm[:, i]))
    transforms = jnp.stack(chain, axis=1)                 # absolute (B, J, 4, 4)
    posed_joints = transforms[:, :, :3, 3]
    tj = jnp.einsum('bjik,bjk->bji', transforms[:, :, :, :3], joints)  # (B,J,4)
    rel_transforms = transforms.at[:, :, :, 3].add(-tj)
    return posed_joints, transforms, rel_transforms


def vertices2landmarks(vertices, faces, lmk_faces_idx, lmk_bary_coords):
    B = vertices.shape[0]
    lmk_faces = faces[lmk_faces_idx]                                   # (B, L, 3)
    lmk_verts = vertices[jnp.arange(B)[:, None, None], lmk_faces]      # (B, L, 3, 3)
    return jnp.einsum('blfi,blf->bli', lmk_verts, lmk_bary_coords)


def prepare_params(params, tv=None):
    """One-time preprocessing of stored buffers into kernel-friendly layouts."""
    v_tpl = params['v_template']                                       # (V, 3)
    Vn = v_tpl.shape[0]
    if tv is None:
        tv = _choose_tile(Vn)
    Vp = _cdiv(Vn, tv) * tv                                            # padded vertex count

    sd_full = jnp.concatenate([params['shapedirs'], params['expr_dirs']],
                              axis=-1)                                 # (V, 3, 20)
    sd_cm = jnp.transpose(sd_full, (1, 2, 0))                          # (3, 20, V)
    pd = params['posedirs']                                            # (486, 3V), col = v*3+c
    pd_cm = jnp.transpose(pd.reshape(POSE_BASIS, Vn, 3), (2, 0, 1))    # (3, 486, V)
    vt_cm = jnp.transpose(v_tpl, (1, 0))[:, None, :]                   # (3, 1, V) bias row
    zpad = jnp.zeros((3, KPAD - KRAW, Vn), jnp.float32)
    W3 = jnp.concatenate([sd_cm, pd_cm, vt_cm, zpad], axis=1)          # (3, 512, V)
    W3 = jnp.pad(W3, ((0, 0), (0, 0), (0, Vp - Vn))).astype(jnp.bfloat16)

    # lbs weights, transposed + padded; padded rows/cols are zero so padded
    # joints/vertices contribute exactly 0.
    W_T = jnp.transpose(params['lbs_weights'], (1, 0))                 # (55, V)
    W_T = jnp.pad(W_T, ((0, JPAD - NUM_TOTAL_JOINTS), (0, Vp - Vn))).astype(jnp.float32)

    # joint regression folded into constants: J = J_template + J_shapedirs @ betas
    J_template = params['J_regressor'] @ v_tpl                          # (55, 3)
    J_shapedirs = jnp.einsum('jv,vck->jck', params['J_regressor'], sd_full)  # (55,3,20)
    return dict(W3=W3, W_T=W_T, J_template=J_template, J_shapedirs=J_shapedirs,
                tv=tv, Vp=Vp, Vn=Vn)


def smplx_forward(params, prep, world_rot, world_tsl, body_shape, body_pose,
                  left_hand_pose, right_hand_pose, expr_shape, jaw_pose,
                  leye_pose, reye_pose, use_pallas=True):
    B = world_rot.shape[0]
    dtype = jnp.float32

    # rot_mode='rotmat', hand_use_pca=False, flat_hand_mean=True -> rotation
    # matrices pass through the rotation converter / hand interface unchanged.
    full_pose = jnp.concatenate([
        world_rot.reshape(B, 1, 3, 3),
        body_pose.reshape(B, NUM_BODY_JOINTS, 3, 3),
        jaw_pose.reshape(B, 1, 3, 3),
        leye_pose.reshape(B, 1, 3, 3),
        reye_pose.reshape(B, 1, 3, 3),
        left_hand_pose.reshape(B, NUM_HAND_JOINTS, 3, 3),
        right_hand_pose.reshape(B, NUM_HAND_JOINTS, 3, 3),
    ], axis=1)                                             # (B, 55, 3, 3)

    shape_components = jnp.concatenate([body_shape, expr_shape], axis=-1)  # (B,20)
    ident = jnp.eye(3, dtype=dtype)
    pose_feature = (full_pose[:, 1:] - ident).reshape(B, -1)               # (B,486)

    if use_pallas:
        # joint regression from precomputed constants (no vertex dependence)
        J = prep['J_template'][None] + jnp.einsum(
            'jck,bk->bjc', prep['J_shapedirs'], shape_components)          # (B,55,3)
    else:
        v_posed, J = lbs_reference(params, shape_components, pose_feature)

    # kinematic chain (55 tiny 4x4 composes) in plain JAX — BEFORE the vertex
    # kernel, so the fused kernel can consume rel_transforms directly.
    J_transformed, transforms_abs, rel_transforms = batch_rigid_transform(
        full_pose, J, params['parents'])

    if use_pallas:
        # activations: [betas|expr|pose_feature|1|0-pad] -> (B, 512) bf16
        S = jnp.concatenate([
            shape_components, pose_feature,
            jnp.ones((B, 1), dtype), jnp.zeros((B, KPAD - KRAW), dtype)],
            axis=-1).astype(jnp.bfloat16)
        # A2 row = (m*3 + c)*B + b, value = rel_transforms[b, j, c, m]; keep f32.
        A = rel_transforms[:, :, :3, :]                                     # (B,55,3,4)
        A2 = jnp.transpose(A, (3, 2, 0, 1)).reshape(12 * B, NUM_TOTAL_JOINTS)
        A2 = jnp.pad(A2, ((0, 0), (0, JPAD - NUM_TOTAL_JOINTS))).astype(jnp.float32)
        # fused blend + skin: v_posed never touches HBM
        verts_cm = lbs_pallas(S, prep['W3'], prep['W_T'], A2, prep['tv'])   # (3,B,Vp)
        vertices = jnp.transpose(verts_cm[:, :, :prep['Vn']], (1, 2, 0))    # (B,V,3)
    else:
        A = rel_transforms
        A_col = jnp.concatenate([A[..., :3, 0], A[..., :3, 1],
                                 A[..., :3, 2], A[..., :3, 3]], axis=-1)    # (B,55,12)
        vertices = skin_ref(v_posed, params['lbs_weights'], A_col)

    # landmarks + vertex-joint selector (gathers, plain JAX)
    lmk_faces_idx = jnp.broadcast_to(params['lmk_faces_idx'][None], (B, L))
    lmk_bary = jnp.broadcast_to(params['lmk_bary_coords'][None], (B, L, 3))
    landmarks = vertices2landmarks(vertices, params['faces'],
                                   lmk_faces_idx, lmk_bary)
    extra_joints = jnp.take(vertices, params['extra_joints_idxs'], axis=1)
    joints = jnp.concatenate([J_transformed, extra_joints, landmarks], axis=1)

    # world translation
    joints = joints + world_tsl[:, None]
    vertices = vertices + world_tsl[:, None]
    transform_abs = transforms_abs.at[..., :3, 3].add(world_tsl[:, None])

    return dict(vertices=vertices, joints=joints, world_rot=world_rot,
                world_tsl=world_tsl, betas=body_shape, expression=expr_shape,
                body_pose=body_pose, left_hand_pose=left_hand_pose,
                right_hand_pose=right_hand_pose, jaw_pose=jaw_pose,
                full_pose=full_pose, transform_abs=transform_abs)


# =========================== synthetic parameters ===========================

def make_params(key):
    ks = jax.random.split(key, 8)
    v_template = jax.random.normal(ks[0], (V, 3), jnp.float32) * 0.1
    shapedirs = jax.random.normal(ks[1], (V, 3, NUM_BETAS), jnp.float32) * 0.01
    expr_dirs = jax.random.normal(ks[2], (V, 3, NUM_EXPR), jnp.float32) * 0.01
    posedirs = jax.random.normal(ks[3], (POSE_BASIS, V * 3), jnp.float32) * 0.001
    jr = jnp.abs(jax.random.normal(ks[4], (NUM_TOTAL_JOINTS, V), jnp.float32)) + 1e-3
    J_regressor = jr / jnp.sum(jr, axis=1, keepdims=True)
    w = jnp.abs(jax.random.normal(ks[5], (V, NUM_TOTAL_JOINTS), jnp.float32)) + 1e-3
    lbs_weights = w / jnp.sum(w, axis=1, keepdims=True)
    parents = tuple([-1] + [(i - 1) // 2 for i in range(1, NUM_TOTAL_JOINTS)])
    faces = jax.random.randint(ks[6], (F, 3), 0, V)
    lmk_faces_idx = (jnp.arange(L) * 13 + 3) % F
    bc = jnp.abs(jax.random.normal(ks[7], (L, 3), jnp.float32)) + 0.1
    lmk_bary_coords = bc / jnp.sum(bc, axis=-1, keepdims=True)
    extra_joints_idxs = (jnp.arange(N_EXTRA) * 23 + 5) % V   # synthetic VERTEX_IDS
    return dict(v_template=v_template, shapedirs=shapedirs, expr_dirs=expr_dirs,
                posedirs=posedirs, J_regressor=J_regressor,
                lbs_weights=lbs_weights, parents=parents, faces=faces,
                lmk_faces_idx=lmk_faces_idx, lmk_bary_coords=lmk_bary_coords,
                extra_joints_idxs=extra_joints_idxs)


def aa_to_rotmat(aa):
    angle = jnp.sqrt(jnp.sum(aa * aa, axis=-1, keepdims=True) + 1e-12)
    axis = aa / angle
    x, y, z = axis[..., 0], axis[..., 1], axis[..., 2]
    c = jnp.cos(angle[..., 0])
    s = jnp.sin(angle[..., 0])
    C = 1.0 - c
    R = jnp.stack([
        jnp.stack([c + x * x * C, x * y * C - z * s, x * z * C + y * s], axis=-1),
        jnp.stack([y * x * C + z * s, c + y * y * C, y * z * C - x * s], axis=-1),
        jnp.stack([z * x * C - y * s, z * y * C + x * s, c + z * z * C], axis=-1),
    ], axis=-2)
    return R


# TODO(synk): face-contour dynamic landmarks (use_face_contour=True) and hand
# PCA decoding are not exercised (module defaults disable them).

if __name__ == "__main__":
    key = jax.random.PRNGKey(0)
    pkey, ikey = jax.random.split(key)
    params = make_params(pkey)
    prep = prepare_params(params)   # one-time layout/dtype/padding prep

    B = 2
    ks = jax.random.split(ikey, 10)
    world_rot = aa_to_rotmat(jax.random.normal(ks[0], (B, 1, 3)) * 0.3)
    body_pose = aa_to_rotmat(jax.random.normal(ks[1], (B, NUM_BODY_JOINTS, 3)) * 0.2)
    left_hand_pose = aa_to_rotmat(jax.random.normal(ks[2], (B, NUM_HAND_JOINTS, 3)) * 0.2)
    right_hand_pose = aa_to_rotmat(jax.random.normal(ks[3], (B, NUM_HAND_JOINTS, 3)) * 0.2)
    jaw_pose = aa_to_rotmat(jax.random.normal(ks[4], (B, 1, 3)) * 0.1)
    leye_pose = aa_to_rotmat(jax.random.normal(ks[5], (B, 1, 3)) * 0.1)
    reye_pose = aa_to_rotmat(jax.random.normal(ks[6], (B, 1, 3)) * 0.1)
    body_shape = jax.random.normal(ks[7], (B, NUM_BETAS))
    expr_shape = jax.random.normal(ks[8], (B, NUM_EXPR))
    world_tsl = jax.random.normal(ks[9], (B, 3)) * 0.5

    args = (world_rot, world_tsl, body_shape, body_pose, left_hand_pose,
            right_hand_pose, expr_shape, jaw_pose, leye_pose, reye_pose)

    out = smplx_forward(params, prep, *args, use_pallas=True)
    out = jax.block_until_ready(out)

    ref = smplx_forward(params, prep, *args, use_pallas=False)
    ref = jax.block_until_ready(ref)

    assert out["vertices"].shape == (B, V, 3)
    assert out["joints"].shape == (B, NUM_TOTAL_JOINTS + N_EXTRA + L, 3)
    assert out["transform_abs"].shape == (B, NUM_TOTAL_JOINTS, 4, 4)
    # Pallas path uses bf16 blend weights (f32 accumulate, f32 transforms);
    # ref path is pure f32.
    for k in ("vertices", "joints", "transform_abs"):
        err = float(jnp.max(jnp.abs(out[k] - ref[k])))
        assert err < 2e-2, (k, err)

    print("KERNEL_OK")
</pallas_src>

<mosaic_0001>
module attributes {stable_mosaic.version = 11 : i64} {
  func.func @_lbs_kernel(%arg0: i32, %arg1: memref<2x512xbf16, #tpu.memory_space<vmem>>, %arg2: memref<3x512x128xbf16, #tpu.memory_space<vmem>>, %arg3: memref<64x128xf32, #tpu.memory_space<vmem>>, %arg4: memref<24x64xf32, #tpu.memory_space<vmem>>, %arg5: memref<3x2x128xf32, #tpu.memory_space<vmem>>) attributes {dimension_semantics = [#tpu.dimension_semantics<parallel>], iteration_bounds = array<i64: 4>, scalar_prefetch = 0 : i64, scratch_operands = 0 : i64, tpu.core_type = #tpu.core_type<tc>, window_params = [{pipeline_mode = #tpu.pipeline_mode<synchronous>, transform_indices = @transform_0, window_bounds = array<i64: 2, 512>}, {transform_indices = @transform_1, window_bounds = array<i64: 3, 512, 128>}, {transform_indices = @transform_2, window_bounds = array<i64: 64, 128>}, {pipeline_mode = #tpu.pipeline_mode<synchronous>, transform_indices = @transform_3, window_bounds = array<i64: 24, 64>}, {transform_indices = @transform_4, window_bounds = array<i64: 3, 2, 128>}]} {
    %c0 = arith.constant 0 : index
    %c0_0 = arith.constant 0 : index
    %0 = vector.load %arg1[%c0, %c0_0] : memref<2x512xbf16, #tpu.memory_space<vmem>>, vector<2x512xbf16>
    %c0_1 = arith.constant 0 : index
    %c0_2 = arith.constant 0 : index
    %c0_3 = arith.constant 0 : index
    %1 = vector.load %arg2[%c0_1, %c0_2, %c0_3] : memref<3x512x128xbf16, #tpu.memory_space<vmem>>, vector<1x512x128xbf16>
    %2 = vector.shape_cast %1 : vector<1x512x128xbf16> to vector<512x128xbf16>
    %cst = arith.constant dense<0.000000e+00> : vector<2x128xf32>
    %3 = tpu.matmul %0, %2, %cst {dimension_numbers = #tpu.dot_dimension_numbers<[1], [0], [0], [1], [0, 0, 1, 1], [], []>} : vector<2x512xbf16>, vector<512x128xbf16>, vector<2x128xf32> -> vector<2x128xf32>
    %c1 = arith.constant 1 : index
    %c0_4 = arith.constant 0 : index
    %c0_5 = arith.constant 0 : index
    %4 = vector.load %arg2[%c1, %c0_4, %c0_5] : memref<3x512x128xbf16, #tpu.memory_space<vmem>>, vector<1x512x128xbf16>
    %5 = vector.shape_cast %4 : vector<1x512x128xbf16> to vector<512x128xbf16>
    %cst_6 = arith.constant dense<0.000000e+00> : vector<2x128xf32>
    %6 = tpu.matmul %0, %5, %cst_6 {dimension_numbers = #tpu.dot_dimension_numbers<[1], [0], [0], [1], [0, 0, 1, 1], [], []>} : vector<2x512xbf16>, vector<512x128xbf16>, vector<2x128xf32> -> vector<2x128xf32>
    %c2 = arith.constant 2 : index
    %c0_7 = arith.constant 0 : index
    %c0_8 = arith.constant 0 : index
    %7 = vector.load %arg2[%c2, %c0_7, %c0_8] : memref<3x512x128xbf16, #tpu.memory_space<vmem>>, vector<1x512x128xbf16>
    %8 = vector.shape_cast %7 : vector<1x512x128xbf16> to vector<512x128xbf16>
    %cst_9 = arith.constant dense<0.000000e+00> : vector<2x128xf32>
    %9 = tpu.matmul %0, %8, %cst_9 {dimension_numbers = #tpu.dot_dimension_numbers<[1], [0], [0], [1], [0, 0, 1, 1], [], []>} : vector<2x512xbf16>, vector<512x128xbf16>, vector<2x128xf32> -> vector<2x128xf32>
    %c0_10 = arith.constant 0 : index
    %c0_11 = arith.constant 0 : index
    %10 = vector.load %arg4[%c0_10, %c0_11] : memref<24x64xf32, #tpu.memory_space<vmem>>, vector<24x64xf32>
    %c0_12 = arith.constant 0 : index
    %c0_13 = arith.constant 0 : index
    %11 = vector.load %arg3[%c0_12, %c0_13] : memref<64x128xf32, #tpu.memory_space<vmem>>, vector<64x128xf32>
    %cst_14 = arith.constant dense<0.000000e+00> : vector<24x128xf32>
    %12 = tpu.matmul %10, %11, %cst_14 {dimension_numbers = #tpu.dot_dimension_numbers<[1], [0], [0], [1], [0, 0, 1, 1], [], []>} : vector<24x64xf32>, vector<64x128xf32>, vector<24x128xf32> -> vector<24x128xf32>
    %13 = vector.extract_strided_slice %12 {offsets = [0, 0], sizes = [2, 128], strides = [1, 1]} : vector<24x128xf32> to vector<2x128xf32>
    %14 = vector.extract_strided_slice %12 {offsets = [6, 0], sizes = [2, 128], strides = [1, 1]} : vector<24x128xf32> to vector<2x128xf32>
    %15 = vector.extract_strided_slice %12 {offsets = [12, 0], sizes = [2, 128], strides = [1, 1]} : vector<24x128xf32> to vector<2x128xf32>
    %16 = vector.extract_strided_slice %12 {offsets = [18, 0], sizes = [2, 128], strides = [1, 1]} : vector<24x128xf32> to vector<2x128xf32>
    %17 = arith.mulf %13, %3 : vector<2x128xf32>
    %18 = arith.mulf %14, %6 : vector<2x128xf32>
    %19 = arith.addf %17, %18 : vector<2x128xf32>
    %20 = arith.mulf %15, %9 : vector<2x128xf32>
    %21 = arith.addf %19, %20 : vector<2x128xf32>
    %22 = arith.addf %21, %16 : vector<2x128xf32>
    %c0_15 = arith.constant 0 : index
    %c0_16 = arith.constant 0 : index
    %c0_17 = arith.constant 0 : index
    %23 = vector.load %arg5[%c0_15, %c0_16, %c0_17] : memref<3x2x128xf32, #tpu.memory_space<vmem>>, vector<1x2x128xf32>
    %24 = vector.shape_cast %23 : vector<1x2x128xf32> to vector<2x128xf32>
    %25 = vector.shape_cast %22 : vector<2x128xf32> to vector<1x2x128xf32>
    tpu.vector_store %arg5[%c0_15, %c0_16, %c0_17], %25 {strides = array<i32>} : memref<3x2x128xf32, #tpu.memory_space<vmem>>, vector<1x2x128xf32>,
    %26 = vector.extract_strided_slice %12 {offsets = [2, 0], sizes = [2, 128], strides = [1, 1]} : vector<24x128xf32> to vector<2x128xf32>
    %27 = vector.extract_strided_slice %12 {offsets = [8, 0], sizes = [2, 128], strides = [1, 1]} : vector<24x128xf32> to vector<2x128xf32>
    %28 = vector.extract_strided_slice %12 {offsets = [14, 0], sizes = [2, 128], strides = [1, 1]} : vector<24x128xf32> to vector<2x128xf32>
    %29 = vector.extract_strided_slice %12 {offsets = [20, 0], sizes = [2, 128], strides = [1, 1]} : vector<24x128xf32> to vector<2x128xf32>
    %30 = arith.mulf %26, %3 : vector<2x128xf32>
    %31 = arith.mulf %27, %6 : vector<2x128xf32>
    %32 = arith.addf %30, %31 : vector<2x128xf32>
    %33 = arith.mulf %28, %9 : vector<2x128xf32>
    %34 = arith.addf %32, %33 : vector<2x128xf32>
    %35 = arith.addf %34, %29 : vector<2x128xf32>
    %c1_18 = arith.constant 1 : index
    %c0_19 = arith.constant 0 : index
    %c0_20 = arith.constant 0 : index
    %36 = vector.load %arg5[%c1_18, %c0_19, %c0_20] : memref<3x2x128xf32, #tpu.memory_space<vmem>>, vector<1x2x128xf32>
    %37 = vector.shape_cast %36 : vector<1x2x128xf32> to vector<2x128xf32>
    %38 = vector.shape_cast %35 : vector<2x128xf32> to vector<1x2x128xf32>
    tpu.vector_store %arg5[%c1_18, %c0_19, %c0_20], %38 {strides = array<i32>} : memref<3x2x128xf32, #tpu.memory_space<vmem>>, vector<1x2x128xf32>,
    %39 = vector.extract_strided_slice %12 {offsets = [4, 0], sizes = [2, 128], strides = [1, 1]} : vector<24x128xf32> to vector<2x128xf32>
    %40 = vector.extract_strided_slice %12 {offsets = [10, 0], sizes = [2, 128], strides = [1, 1]} : vector<24x128xf32> to vector<2x128xf32>
    %41 = vector.extract_strided_slice %12 {offsets = [16, 0], sizes = [2, 128], strides = [1, 1]} : vector<24x128xf32> to vector<2x128xf32>
    %42 = vector.extract_strided_slice %12 {offsets = [22, 0], sizes = [2, 128], strides = [1, 1]} : vector<24x128xf32> to vector<2x128xf32>
    %43 = arith.mulf %39, %3 : vector<2x128xf32>
    %44 = arith.mulf %40, %6 : vector<2x128xf32>
    %45 = arith.addf %43, %44 : vector<2x128xf32>
    %46 = arith.mulf %41, %9 : vector<2x128xf32>
    %47 = arith.addf %45, %46 : vector<2x128xf32>
    %48 = arith.addf %47, %42 : vector<2x128xf32>
    %c2_21 = arith.constant 2 : index
    %c0_22 = arith.constant 0 : index
    %c0_23 = arith.constant 0 : index
    %49 = vector.load %arg5[%c2_21, %c0_22, %c0_23] : memref<3x2x128xf32, #tpu.memory_space<vmem>>, vector<1x2x128xf32>
    %50 = vector.shape_cast %49 : vector<1x2x128xf32> to vector<2x128xf32>
    %51 = vector.shape_cast %48 : vector<2x128xf32> to vector<1x2x128xf32>
    tpu.vector_store %arg5[%c2_21, %c0_22, %c0_23], %51 {strides = array<i32>} : memref<3x2x128xf32, #tpu.memory_space<vmem>>, vector<1x2x128xf32>,
    return
  }
  func.func @transform_0(%arg0: i32) -> (i32, i32) {
    %c0_i32 = arith.constant 0 : i32
    %c0_i32_0 = arith.constant 0 : i32
    %c0_i32_1 = arith.constant 0 : i32
    return %c0_i32, %c0_i32_0 : i32, i32
  }
  func.func @transform_1(%arg0: i32) -> (i32, i32, i32) {
    %c0_i32 = arith.constant 0 : i32
    %c0_i32_0 = arith.constant 0 : i32
    %c0_i32_1 = arith.constant 0 : i32
    return %c0_i32, %c0_i32_0, %arg0 : i32, i32, i32
  }
  func.func @transform_2(%arg0: i32) -> (i32, i32) {
    %c0_i32 = arith.constant 0 : i32
    %c0_i32_0 = arith.constant 0 : i32
    return %c0_i32, %arg0 : i32, i32
  }
  func.func @transform_3(%arg0: i32) -> (i32, i32) {
    %c0_i32 = arith.constant 0 : i32
    %c0_i32_0 = arith.constant 0 : i32
    %c0_i32_1 = arith.constant 0 : i32
    return %c0_i32, %c0_i32_0 : i32, i32
  }
  func.func @transform_4(%arg0: i32) -> (i32, i32, i32) {
    %c0_i32 = arith.constant 0 : i32
    %c0_i32_0 = arith.constant 0 : i32
    %c0_i32_1 = arith.constant 0 : i32
    return %c0_i32, %c0_i32_0, %arg0 : i32, i32, i32
  }
}

</mosaic_0001>

<llo_original>
// kernel: tpu_custom_call.1
$region0: #{tpu_custom_call.1}
  #allocation0 [shape = 'u32[]', space=smem, size = 0x4, offset = 0x4, fixed_abs, tag = 'smem constant byte address 0x4 - core index']
  #allocation1 [shape = 'u32[144,128]{1,0:T(1,128)}', space=vmem, size = 0x12000, scoped, tag = 'internal scratch']
  %s0 = inlined_call_operand.hbm [shape: bf16[2,512], index: 0, kind: input, shape index: {}]
  %s1 = inlined_call_operand.hbm [shape: bf16[3,512,512], index: 1, kind: input, shape index: {}]
  %s2 = inlined_call_operand.hbm [shape: f32[64,512], index: 2, kind: input, shape index: {}]
  %s3 = inlined_call_operand.hbm [shape: f32[24,64], index: 3, kind: input, shape index: {}]
  %s4 = inlined_call_operand.hbm [shape: f32[3,2,512], index: 4, kind: output, shape index: {}]
  %s5 = sld [smem:[#allocation0]]
  $region65: #{tpu_custom_call.1} parent=0
    _
  %s7 = ssub.s32 1, %s5
  %s8 = scalar_select 0, %s7, %s5
  $region1: #{tpu_custom_call.1} parent=0
    #allocation2 [shape = 'u8[2048]{0}', space=vmem, size = 0x800, scoped, tag = 'input window, operand 0, single buffered']
    #allocation3 [shape = 's32[2]{0}', space=sflag, size = 0x8, scoped, tag = 'scoped memory for tpu_custom_call.1']
    #allocation4 [shape = 's32[2]{0}', space=sflag, size = 0x8, scoped, tag = 'scoped memory for tpu_custom_call.1']
    #allocation5 [shape = 'u8[786432]{0}', space=vmem, size = 0xc0000, scoped, tag = 'input window, operand 1']
    #allocation6 [shape = 's32[2]{0}', space=sflag, size = 0x8, scoped, tag = 'scoped memory for tpu_custom_call.1']
    #allocation7 [shape = 'u8[65536]{0}', space=vmem, size = 0x10000, scoped, tag = 'input window, operand 2']
    #allocation8 [shape = 'u8[12288]{0}', space=vmem, size = 0x3000, scoped, tag = 'input window, operand 3, single buffered']
    #allocation9 [shape = 's32[1]{0}', space=sflag, size = 0x4, scoped, tag = 'scoped memory for tpu_custom_call.1']
    #allocation10 [shape = 'u8[6144]{0}', space=vmem, size = 0x1800, scoped, tag = 'output window, operand 0']
    %9 = vsyncpa [#allocation3], 0
    %10 = vsyncpa [#allocation6], 0
    %s11 = scalar_lea.sflag [#allocation6], 1
    %12 = vsyncpa %s11, 0
    %13 = vsyncpa [#allocation9], 0
    %14 = vsyncpa [#allocation4], 0
    %s15 = scalar_lea.sflag [#allocation4], 1
    %16 = vsyncpa %s15, 0
    loop: start=0, step=1, limit=6
    $region2: #{tpu_custom_call.1} parent=1 // loop_pre_header
      _
    $region3: #{tpu_custom_call.1} parent=1 // loop_header
      %s18 = sphi 0, %s22
      %p19 = scmp.ge.s32.totalorder %s18, 6
      %s26 = sphi 0, %s26
      %s28 = sphi 0, %s26
      %s29 = sphi 0, %s28
      %s43 = sphi 0, %s29
      %s49 = sphi 0, %s51
      %s52 = sphi 0, %s49
      %s53 = sphi 0, %s52
      %s69 = sphi 0, %s53
      %s75 = sphi 0, %s77
      %s78 = sphi 0, %s75
      %s79 = sphi 0, %s78
      %s95 = sphi 0, %s79
      %s99 = sphi 0, %s99
      %s101 = sphi 0, %s99
      %s102 = sphi 0, %s101
      %s116 = sphi 0, %s102
      %s122 = sphi 0, %s124
      %s125 = sphi 0, %s122
      %s126 = sphi 0, %s125
      %s142 = sphi 0, %s126
    $region4: #{tpu_custom_call.1} parent=1 // loop_header_branch
      %21 = sbr.rel (%p19) target = $region8
    $region5: #{tpu_custom_call.1} parent=1 // loop_body
      %s23 = ssub.s32 %s18, 1
      %s24 = ssub.s32 %s18, 2
      %s25 = sadd.s32 %s18, 1
      %s27 = sadd.s32 %s26, 1
      %p30 = scmp.eq.s32.totalorder %s18, 3
      %p31 = scmp.ne.s32.totalorder %s26, %s28
      %p32 = scmp.eq.s32.totalorder %s18, 0
      %p33 = por %p31, %p32
      %p34 = scmp.ne.s32.totalorder %s26, %s28
      %p35 = scmp.eq.s32.totalorder %s23, 3
      %p36 = por %p34, %p35
      %p37 = scmp.ne.s32.totalorder %s28, %s29
      %p38 = scmp.eq.s32.totalorder %s23, 0
      %p39 = por %p37, %p38
      %p40 = scmp.ne.s32.totalorder %s28, %s29
      %p41 = scmp.eq.s32.totalorder %s24, 3
      %p42 = por %p40, %p41
      %p44 = scmp.ne.s32.totalorder %s29, %s43
      %p45 = scmp.eq.s32.totalorder %s24, 0
      %p46 = por %p44, %p45
      %s47 = ssub.s32 %s18, %s25
      %p48 = scmp.eq.s32.totalorder %s47, 0
      %s50 = sadd.s32 %s49, 1
      %s51 = scalar_select %p48, %s49, %s50
      %p54 = pneg %p48
      %p55 = scmp.eq.s32.totalorder %s18, 3
      %p56 = por %p54, %p55
      %p57 = scmp.ne.s32.totalorder %s49, %s52
      %p58 = scmp.eq.s32.totalorder %s18, 0
      %p59 = por %p57, %p58
      %p60 = scmp.ne.s32.totalorder %s49, %s52
      %p61 = scmp.eq.s32.totalorder %s23, 3
      %p62 = por %p60, %p61
      %p63 = scmp.ne.s32.totalorder %s52, %s53
      %p64 = scmp.eq.s32.totalorder %s23, 0
      %p65 = por %p63, %p64
      %p66 = scmp.ne.s32.totalorder %s52, %s53
      %p67 = scmp.eq.s32.totalorder %s24, 3
      %p68 = por %p66, %p67
      %p70 = scmp.ne.s32.totalorder %s53, %s69
      %p71 = scmp.eq.s32.totalorder %s24, 0
      %p72 = por %p70, %p71
      %s73 = ssub.s32 %s18, %s25
      %p74 = scmp.eq.s32.totalorder %s73, 0
      %s76 = sadd.s32 %s75, 1
      %s77 = scalar_select %p74, %s75, %s76
      %p80 = pneg %p74
      %p81 = scmp.eq.s32.totalorder %s18, 3
      %p82 = por %p80, %p81
      %p83 = scmp.ne.s32.totalorder %s75, %s78
      %p84 = scmp.eq.s32.totalorder %s18, 0
      %p85 = por %p83, %p84
      %p86 = scmp.ne.s32.totalorder %s75, %s78
      %p87 = scmp.eq.s32.totalorder %s23, 3
      %p88 = por %p86, %p87
      %p89 = scmp.ne.s32.totalorder %s78, %s79
      %p90 = scmp.eq.s32.totalorder %s23, 0
      %p91 = por %p89, %p90
      %p92 = scmp.ne.s32.totalorder %s78, %s79
      %p93 = scmp.eq.s32.totalorder %s24, 3
      %p94 = por %p92, %p93
      %p96 = scmp.ne.s32.totalorder %s79, %s95
      %p97 = scmp.eq.s32.totalorder %s24, 0
      %p98 = por %p96, %p97
      %s100 = sadd.s32 %s99, 1
      %p103 = scmp.eq.s32.totalorder %s18, 3
      %p104 = scmp.ne.s32.totalorder %s99, %s101
      %p105 = scmp.eq.s32.totalorder %s18, 0
      %p106 = por %p104, %p105
      %p107 = scmp.ne.s32.totalorder %s99, %s101
      %p108 = scmp.eq.s32.totalorder %s23, 3
      %p109 = por %p107, %p108
      %p110 = scmp.ne.s32.totalorder %s101, %s102
      %p111 = scmp.eq.s32.totalorder %s23, 0
      %p112 = por %p110, %p111
      %p113 = scmp.ne.s32.totalorder %s101, %s102
      %p114 = scmp.eq.s32.totalorder %s24, 3
      %p115 = por %p113, %p114
      %p117 = scmp.ne.s32.totalorder %s102, %s116
      %p118 = scmp.eq.s32.totalorder %s24, 0
      %p119 = por %p117, %p118
      %s120 = ssub.s32 %s18, %s25
      %p121 = scmp.eq.s32.totalorder %s120, 0
      %s123 = sadd.s32 %s122, 1
      %s124 = scalar_select %p121, %s122, %s123
      %p127 = pneg %p121
      %p128 = scmp.eq.s32.totalorder %s18, 3
      %p129 = por %p127, %p128
      %p130 = scmp.ne.s32.totalorder %s122, %s125
      %p131 = scmp.eq.s32.totalorder %s18, 0
      %p132 = por %p130, %p131
      %p133 = scmp.ne.s32.totalorder %s122, %s125
      %p134 = scmp.eq.s32.totalorder %s23, 3
      %p135 = por %p133, %p134
      %p136 = scmp.ne.s32.totalorder %s125, %s126
      %p137 = scmp.eq.s32.totalorder %s23, 0
      %p138 = por %p136, %p137
      %p139 = scmp.ne.s32.totalorder %s125, %s126
      %p140 = scmp.eq.s32.totalorder %s24, 3
      %p141 = por %p139, %p140
      %p143 = scmp.ne.s32.totalorder %s126, %s142
      %p144 = scmp.eq.s32.totalorder %s24, 0
      %p145 = por %p143, %p144
      %p146 = scmp.le.s32.totalorder 1, %s18
      %p147 = scmp.lt.s32.totalorder %s18, 5
      %p148 = pnand %p146, %p147
      %p149 = pneg %p148
      // Predicated region
      $region9: #{tpu_custom_call.1} parent=5 // pred_check
        _
      $region10: #{tpu_custom_call.1} parent=5 // pred_check_branch
        %151 = sbr.rel (%p148) target = $region12
      $region11: #{tpu_custom_call.1} parent=5 // pred_region
        %s152 = ssub.s32 %s18, 1
        // Predicated region
        $region13: #{tpu_custom_call.1} parent=11 // pred_check
          %p153 = pneg %p39
        $region14: #{tpu_custom_call.1} parent=11 // pred_check_branch
          %155 = sbr.rel (%p153) target = $region16
        $region15: #{tpu_custom_call.1} parent=11 // pred_region
          %s157 = ssub.s32 64, 64
          %158 = vsyncadd [#allocation3], %s157
          %s160 = sshll.u32 [#allocation2], 4
          %s161 = int_to_ptr.vmem [resolvable:$true] %s160
          %163 = dma.hbm_to_vmem [thread:$0]  %s0, 64, %s161, [#allocation3]
        $region16: #{tpu_custom_call.1} parent=11 // pred_fallthru
          _
        // Predicated region
        $region17: #{tpu_custom_call.1} parent=11 // pred_check
          %p164 = pneg %p112
        $region18: #{tpu_custom_call.1} parent=11 // pred_check_branch
          %166 = sbr.rel (%p164) target = $region20
        $region19: #{tpu_custom_call.1} parent=11 // pred_region
          %s168 = ssub.s32 384, 384
          %169 = vsyncadd [#allocation9], %s168
          %s170 = sshll.u32 [#allocation8], 4
          %s171 = int_to_ptr.vmem [resolvable:$true] %s170
          %176 = dma.hbm_to_vmem [thread:$0]  %s3, 384, %s171, [#allocation9], 128, 128, 8
        $region20: #{tpu_custom_call.1} parent=11 // pred_fallthru
          _
      $region12: #{tpu_custom_call.1} parent=5 // pred_fallthru
        _
      %p177 = scmp.lt.s32.totalorder %s18, 4
      // Predicated region
      $region21: #{tpu_custom_call.1} parent=5 // pred_check
        %p178 = pneg %p177
      $region22: #{tpu_custom_call.1} parent=5 // pred_check_branch
        %180 = sbr.rel (%p178) target = $region24
      $region23: #{tpu_custom_call.1} parent=5 // pred_region
        // Predicated region
        $region25: #{tpu_custom_call.1} parent=23 // pred_check
          %p181 = pneg %p59
        $region26: #{tpu_custom_call.1} parent=23 // pred_check_branch
          %183 = sbr.rel (%p181) target = $region28
        $region27: #{tpu_custom_call.1} parent=23 // pred_region
          %s184 = sand.u32 %s18, 1
          %s185 = scalar_lea.sflag [#allocation6], %s184
          %s186 = sand.u32 %s49, 1
          %s187 = smul.addr %s186, 768
          %s188 = scalar_lea.vmem [#allocation5], %s187
          %s190 = ssub.s32 12288, 12288
          %191 = vsyncadd %s185, %s190
          %s192 = smul.addr %s18, 64
          %s193 = scalar_lea.hbm %s1, %s192
          %s194 = sshll.u32 %s188, 4
          %s195 = int_to_ptr.vmem [resolvable:$true] %s194
          %200 = dma.hbm_to_vmem [thread:$0]  %s193, 12288, %s195, %s185, 256, 64, 4
        $region28: #{tpu_custom_call.1} parent=23 // pred_fallthru
          _
        // Predicated region
        $region29: #{tpu_custom_call.1} parent=23 // pred_check
          %p201 = pneg %p85
        $region30: #{tpu_custom_call.1} parent=23 // pred_check_branch
          %203 = sbr.rel (%p201) target = $region32
        $region31: #{tpu_custom_call.1} parent=23 // pred_region
          %s204 = sand.u32 %s18, 1
          %s205 = scalar_lea.sflag [#allocation6], %s204
          %s206 = sand.u32 %s75, 1
          %s207 = smul.addr %s206, 64
          %s208 = scalar_lea.vmem [#allocation7], %s207
          %s210 = ssub.s32 1024, 1024
          %211 = vsyncadd %s205, %s210
          %s212 = smul.addr %s18, 128
          %s213 = scalar_lea.hbm %s2, %s212
          %s214 = sshll.u32 %s208, 4
          %s215 = int_to_ptr.vmem [resolvable:$true] %s214
          %220 = dma.hbm_to_vmem [thread:$0]  %s213, 1024, %s215, %s205, 512, 128, 8
        $region32: #{tpu_custom_call.1} parent=23 // pred_fallthru
          _
      $region24: #{tpu_custom_call.1} parent=5 // pred_fallthru
        _
      %p221 = scmp.le.s32.totalorder 1, %s18
      %p222 = scmp.lt.s32.totalorder %s18, 5
      %p223 = pnand %p221, %p222
      %p224 = pneg %p223
      // Predicated region
      $region33: #{tpu_custom_call.1} parent=5 // pred_check
        _
      $region34: #{tpu_custom_call.1} parent=5 // pred_check_branch
        %226 = sbr.rel (%p223) target = $region36
      $region35: #{tpu_custom_call.1} parent=5 // pred_region
        %s227 = ssub.s32 %s18, 1
        // Predicated region
        $region37: #{tpu_custom_call.1} parent=35 // pred_check
          %p228 = pneg %p39
        $region38: #{tpu_custom_call.1} parent=35 // pred_check_branch
          %230 = sbr.rel (%p228) target = $region40
        $region39: #{tpu_custom_call.1} parent=35 // pred_region
          %231 = dma.done [#allocation3], 64
        $region40: #{tpu_custom_call.1} parent=35 // pred_fallthru
          _
        %s232 = sand.u32 %s23, 1
        %s233 = scalar_lea.sflag [#allocation6], %s232
        %s234 = sand.u32 %s52, 1
        %s235 = smul.addr %s234, 768
        %s236 = scalar_lea.vmem [#allocation5], %s235
        // Predicated region
        $region41: #{tpu_custom_call.1} parent=35 // pred_check
          %p237 = pneg %p65
        $region42: #{tpu_custom_call.1} parent=35 // pred_check_branch
          %239 = sbr.rel (%p237) target = $region44
        $region43: #{tpu_custom_call.1} parent=35 // pred_region
          %240 = dma.done %s233, 12288
        $region44: #{tpu_custom_call.1} parent=35 // pred_fallthru
          _
        %s241 = sand.u32 %s23, 1
        %s242 = scalar_lea.sflag [#allocation6], %s241
        %s243 = sand.u32 %s78, 1
        %s244 = smul.addr %s243, 64
        %s245 = scalar_lea.vmem [#allocation7], %s244
        // Predicated region
        $region45: #{tpu_custom_call.1} parent=35 // pred_check
          %p246 = pneg %p91
        $region46: #{tpu_custom_call.1} parent=35 // pred_check_branch
          %248 = sbr.rel (%p246) target = $region48
        $region47: #{tpu_custom_call.1} parent=35 // pred_region
          %249 = dma.done %s242, 1024
        $region48: #{tpu_custom_call.1} parent=35 // pred_fallthru
          _
        // Predicated region
        $region49: #{tpu_custom_call.1} parent=35 // pred_check
          %p250 = pneg %p112
        $region50: #{tpu_custom_call.1} parent=35 // pred_check_branch
          %252 = sbr.rel (%p250) target = $region52
        $region51: #{tpu_custom_call.1} parent=35 // pred_region
          %253 = dma.done [#allocation9], 384
        $region52: #{tpu_custom_call.1} parent=35 // pred_fallthru
          _
        %p254 = pneg %p39
        %p255 = pneg %p36
        %s256 = sand.u32 %s23, 1
        %s257 = scalar_lea.sflag [#allocation6], %s256
        %s258 = sand.u32 %s52, 1
        %s259 = smul.addr %s258, 768
        %s260 = scalar_lea.vmem [#allocation5], %s259
        %p261 = pneg %p65
        %p262 = pneg %p62
        %s263 = sand.u32 %s23, 1
        %s264 = scalar_lea.sflag [#allocation6], %s263
        %s265 = sand.u32 %s78, 1
        %s266 = smul.addr %s265, 64
        %s267 = scalar_lea.vmem [#allocation7], %s266
        %p268 = pneg %p91
        %p269 = pneg %p88
        %p270 = pneg %p112
        %p271 = pneg %p109
        %p272 = pneg %p138
        %p273 = pneg %p135
        %s274 = sand.u32 %s125, 1
        %s275 = scalar_lea.sflag [#allocation4], %s274
        %s276 = sand.u32 %s125, 1
        %s277 = smul.addr %s276, 6
        %s278 = scalar_lea.vmem [#allocation10], %s277
        %v280 = vld [vmem:[#allocation2] sm:$0xf]
        %v281 = vld [vmem:[%s236] sm:$0xf]
        %v282 = vld [vmem:[%s236 + $0x4] sm:$0xf]
        %v283 = vld [vmem:[%s236 + $0x8] sm:$0xf]
        %v284 = vld [vmem:[%s236 + $0xc] sm:$0xf]
        %v285 = vld [vmem:[%s236 + $0x10] sm:$0xf]
        %v286 = vld [vmem:[%s236 + $0x14] sm:$0xf]
        %v287 = vld [vmem:[%s236 + $0x18] sm:$0xf]
        %v288 = vld [vmem:[%s236 + $0x1c] sm:$0xf]
        %v289 = vld [vmem:[%s236 + $0x20] sm:$0xf]
        %v290 = vld [vmem:[%s236 + $0x24] sm:$0xf]
        %v291 = vld [vmem:[%s236 + $0x28] sm:$0xf]
        %v292 = vld [vmem:[%s236 + $0x2c] sm:$0xf]
        %v293 = vld [vmem:[%s236 + $0x30] sm:$0xf]
        %v294 = vld [vmem:[%s236 + $0x34] sm:$0xf]
        %v295 = vld [vmem:[%s236 + $0x38] sm:$0xf]
        %v296 = vld [vmem:[%s236 + $0x3c] sm:$0xf]
        %v297 = vld [vmem:[%s236 + $0x40] sm:$0xf]
        %v298 = vld [vmem:[%s236 + $0x44] sm:$0xf]
        %v299 = vld [vmem:[%s236 + $0x48] sm:$0xf]
        %v300 = vld [vmem:[%s236 + $0x4c] sm:$0xf]
        %v301 = vld [vmem:[%s236 + $0x50] sm:$0xf]
        %v302 = vld [vmem:[%s236 + $0x54] sm:$0xf]
        %v303 = vld [vmem:[%s236 + $0x58] sm:$0xf]
        %v304 = vld [vmem:[%s236 + $0x5c] sm:$0xf]
        %v305 = vld [vmem:[%s236 + $0x60] sm:$0xf]
        %v306 = vld [vmem:[%s236 + $0x64] sm:$0xf]
        %v307 = vld [vmem:[%s236 + $0x68] sm:$0xf]
        %v308 = vld [vmem:[%s236 + $0x6c] sm:$0xf]
        %v309 = vld [vmem:[%s236 + $0x70] sm:$0xf]
        %v310 = vld [vmem:[%s236 + $0x74] sm:$0xf]
        %v311 = vld [vmem:[%s236 + $0x78] sm:$0xf]
        %v312 = vld [vmem:[%s236 + $0x7c] sm:$0xf]
        %v313 = vld [vmem:[%s236 + $0x80] sm:$0xf]
        %v314 = vld [vmem:[%s236 + $0x84] sm:$0xf]
        %v315 = vld [vmem:[%s236 + $0x88] sm:$0xf]
        %v316 = vld [vmem:[%s236 + $0x8c] sm:$0xf]
        %v317 = vld [vmem:[%s236 + $0x90] sm:$0xf]
        %v318 = vld [vmem:[%s236 + $0x94] sm:$0xf]
        %v319 = vld [vmem:[%s236 + $0x98] sm:$0xf]
        %v320 = vld [vmem:[%s236 + $0x9c] sm:$0xf]
        %v321 = vld [vmem:[%s236 + $0xa0] sm:$0xf]
        %v322 = vld [vmem:[%s236 + $0xa4] sm:$0xf]
        %v323 = vld [vmem:[%s236 + $0xa8] sm:$0xf]
        %v324 = vld [vmem:[%s236 + $0xac] sm:$0xf]
        %v325 = vld [vmem:[%s236 + $0xb0] sm:$0xf]
        %v326 = vld [vmem:[%s236 + $0xb4] sm:$0xf]
        %v327 = vld [vmem:[%s236 + $0xb8] sm:$0xf]
        %v328 = vld [vmem:[%s236 + $0xbc] sm:$0xf]
        %v329 = vld [vmem:[%s236 + $0xc0] sm:$0xf]
        %v330 = vld [vmem:[%s236 + $0xc4] sm:$0xf]
        %v331 = vld [vmem:[%s236 + $0xc8] sm:$0xf]
        %v332 = vld [vmem:[%s236 + $0xcc] sm:$0xf]
        %v333 = vld [vmem:[%s236 + $0xd0] sm:$0xf]
        %v334 = vld [vmem:[%s236 + $0xd4] sm:$0xf]
        %v335 = vld [vmem:[%s236 + $0xd8] sm:$0xf]
        %v336 = vld [vmem:[%s236 + $0xdc] sm:$0xf]
        %v337 = vld [vmem:[%s236 + $0xe0] sm:$0xf]
        %v338 = vld [vmem:[%s236 + $0xe4] sm:$0xf]
        %v339 = vld [vmem:[%s236 + $0xe8] sm:$0xf]
        %v340 = vld [vmem:[%s236 + $0xec] sm:$0xf]
        %v341 = vld [vmem:[%s236 + $0xf0] sm:$0xf]
        %v342 = vld [vmem:[%s236 + $0xf4] sm:$0xf]
        %v343 = vld [vmem:[%s236 + $0xf8] sm:$0xf]
        %v344 = vld [vmem:[%s236 + $0xfc] sm:$0xf]
        %v347 = vunpack.c.l.s4 1966171168
        %v348 = vunpack.c.0.s8 %v347
        %v349 = vlaneseq
        %v350 = vshrl.u32 %v349, 7
        %v351 = vsub.s32 %v348, %v350
        %v352 = vrot.slane %v280, %v351
        %v353 = vcombine.high %v352, %v352
        %v355 = vunpack.c.l.s4 1966171168
        %v356 = vunpack.c.0.s8 %v355
        %v357 = vlaneseq
        %v358 = vshrl.u32 %v357, 7
        %v359 = vsub.s32 %v356, %v358
        %v360 = vrot.slane %v352, %v359
        %v362 = vunpack.c.l.s4 1966171168
        %v363 = vunpack.c.0.s8 %v362
        %v364 = vlaneseq
        %v365 = vshrl.u32 %v364, 7
        %v366 = vsub.s32 %v363, %v365
        %v367 = vrot.slane %v353, %v366
        %v368 = vcombine.high %v360, %v360
        %v369 = vcombine.high %v367, %v367
        %v438 = vunpack.c.l.b16 %v281
        %v439 = vunpack.c.l.b16 %v282
        %v440 = vunpack.c.l.b16 %v283
        %v441 = vunpack.c.l.b16 %v284
        %v442 = vunpack.c.l.b16 %v285
        %v443 = vunpack.c.l.b16 %v286
        %v444 = vunpack.c.l.b16 %v287
        %v445 = vunpack.c.l.b16 %v288
        %v446 = vunpack.c.l.b16 %v289
        %v447 = vunpack.c.l.b16 %v290
        %v448 = vunpack.c.l.b16 %v291
        %v449 = vunpack.c.l.b16 %v292
        %v450 = vunpack.c.l.b16 %v293
        %v451 = vunpack.c.l.b16 %v294
        %v452 = vunpack.c.l.b16 %v295
        %v453 = vunpack.c.l.b16 %v296
        %v454 = vunpack.c.l.b16 %v297
        %v455 = vunpack.c.l.b16 %v298
        %v456 = vunpack.c.l.b16 %v299
        %v457 = vunpack.c.l.b16 %v300
        %v458 = vunpack.c.l.b16 %v301
        %v459 = vunpack.c.l.b16 %v302
        %v460 = vunpack.c.l.b16 %v303
        %v461 = vunpack.c.l.b16 %v304
        %v462 = vunpack.c.l.b16 %v305
        %v463 = vunpack.c.l.b16 %v306
        %v464 = vunpack.c.l.b16 %v307
        %v465 = vunpack.c.l.b16 %v308
        %v466 = vunpack.c.l.b16 %v309
        %v467 = vunpack.c.l.b16 %v310
        %v468 = vunpack.c.l.b16 %v311
        %v469 = vunpack.c.l.b16 %v312
        %v470 = vunpack.c.l.b16 %v313
        %v471 = vunpack.c.l.b16 %v314
        %v472 = vunpack.c.l.b16 %v315
        %v473 = vunpack.c.l.b16 %v316
        %v474 = vunpack.c.l.b16 %v317
        %v475 = vunpack.c.l.b16 %v318
        %v476 = vunpack.c.l.b16 %v319
        %v477 = vunpack.c.l.b16 %v320
        %v478 = vunpack.c.l.b16 %v321
        %v479 = vunpack.c.l.b16 %v322
        %v480 = vunpack.c.l.b16 %v323
        %v481 = vunpack.c.l.b16 %v324
        %v482 = vunpack.c.l.b16 %v325
        %v483 = vunpack.c.l.b16 %v326
        %v484 = vunpack.c.l.b16 %v327
        %v485 = vunpack.c.l.b16 %v328
        %v486 = vunpack.c.l.b16 %v329
        %v487 = vunpack.c.l.b16 %v330
        %v488 = vunpack.c.l.b16 %v331
        %v489 = vunpack.c.l.b16 %v332
        %v490 = vunpack.c.l.b16 %v333
        %v491 = vunpack.c.l.b16 %v334
        %v492 = vunpack.c.l.b16 %v335
        %v493 = vunpack.c.l.b16 %v336
        %v494 = vunpack.c.l.b16 %v337
        %v495 = vunpack.c.l.b16 %v338
        %v496 = vunpack.c.l.b16 %v339
        %v497 = vunpack.c.l.b16 %v340
        %v498 = vunpack.c.l.b16 %v341
        %v499 = vunpack.c.l.b16 %v342
        %v500 = vunpack.c.l.b16 %v343
        %v501 = vunpack.c.l.b16 %v344
        %v502 = vpack.c.b16 %v439, %v438
        %v503 = vpack.c.b16 %v441, %v440
        %v504 = vpack.c.b16 %v443, %v442
        %v505 = vpack.c.b16 %v445, %v444
        %v506 = vpack.c.b16 %v447, %v446
        %v507 = vpack.c.b16 %v449, %v448
        %v508 = vpack.c.b16 %v451, %v450
        %v509 = vpack.c.b16 %v453, %v452
        %v510 = vpack.c.b16 %v455, %v454
        %v511 = vpack.c.b16 %v457, %v456
        %v512 = vpack.c.b16 %v459, %v458
        %v513 = vpack.c.b16 %v461, %v460
        %v514 = vpack.c.b16 %v463, %v462
        %v515 = vpack.c.b16 %v465, %v464
        %v516 = vpack.c.b16 %v467, %v466
        %v517 = vpack.c.b16 %v469, %v468
        %v518 = vpack.c.b16 %v471, %v470
        %v519 = vpack.c.b16 %v473, %v472
        %v520 = vpack.c.b16 %v475, %v474
        %v521 = vpack.c.b16 %v477, %v476
        %v522 = vpack.c.b16 %v479, %v478
        %v523 = vpack.c.b16 %v481, %v480
        %v524 = vpack.c.b16 %v483, %v482
        %v525 = vpack.c.b16 %v485, %v484
        %v526 = vpack.c.b16 %v487, %v486
        %v527 = vpack.c.b16 %v489, %v488
        %v528 = vpack.c.b16 %v491, %v490
        %v529 = vpack.c.b16 %v493, %v492
        %v530 = vpack.c.b16 %v495, %v494
        %v531 = vpack.c.b16 %v497, %v496
        %v532 = vpack.c.b16 %v499, %v498
        %v533 = vpack.c.b16 %v501, %v500
        %566 = vmatprep.subr.bf16.mxu0 0
        %567 = vmatpush1.bf16.msra.mxu0 %v502
        %568 = vmatprep.subr.bf16.mxu0 0
        %569 = vmatpush1.bf16.msra.mxu0 %v503
        %570 = vmatprep.subr.bf16.mxu0 0
        %571 = vmatpush1.bf16.msra.mxu0 %v504
        %572 = vmatprep.subr.bf16.mxu0 0
        %573 = vmatpush1.bf16.msra.mxu0 %v505
        %574 = vmatprep.subr.bf16.mxu0 0
        %575 = vmatpush1.bf16.msra.mxu0 %v506
        %576 = vmatprep.subr.bf16.mxu0 0
        %577 = vmatpush1.bf16.msra.mxu0 %v507
        %578 = vmatprep.subr.bf16.mxu0 0
        %579 = vmatpush1.bf16.msra.mxu0 %v508
        %580 = vmatprep.subr.bf16.mxu0 0
        %581 = vmatpush1.bf16.msra.mxu0 %v509
        %582 = vmatprep.subr.bf16.mxu0 0
        %583 = vmatpush1.bf16.msra.mxu0 %v510
        %584 = vmatprep.subr.bf16.mxu0 0
        %585 = vmatpush1.bf16.msra.mxu0 %v511
        %586 = vmatprep.subr.bf16.mxu0 0
        %587 = vmatpush1.bf16.msra.mxu0 %v512
        %588 = vmatprep.subr.bf16.mxu0 0
        %589 = vmatpush1.bf16.msra.mxu0 %v513
        %590 = vmatprep.subr.bf16.mxu0 0
        %591 = vmatpush1.bf16.msra.mxu0 %v514
        %592 = vmatprep.subr.bf16.mxu0 0
        %593 = vmatpush1.bf16.msra.mxu0 %v515
        %594 = vmatprep.subr.bf16.mxu0 0
        %595 = vmatpush1.bf16.msra.mxu0 %v516
        %596 = vmatprep.subr.bf16.mxu0 0
        %597 = vmatpush1.bf16.msra.mxu0 %v517
        %598 = vmatprep.mubr.bf16.mxu0 %v367
        %599 = vmatmul.mubr.bf16.gmra.mrb[0].mxu0 %v360
        %v600 = vpop.f32.mrb[0].mxu0
        %v601 = vadd.f32 0.0, %v600
        %v602 = vpop.f32.mrb[0].mxu0
        %v603 = vpop.f32.mrb[0].mxu0
        %v604 = vpop.f32.mrb[0].mxu0
        %605 = vdwg.mxu0
        %606 = vmatprep.subr.bf16.mxu0 0
        %607 = vmatpush1.bf16.msra.mxu0 %v518
        %608 = vmatprep.subr.bf16.mxu0 0
        %609 = vmatpush1.bf16.msra.mxu0 %v519
        %610 = vmatprep.subr.bf16.mxu0 0
        %611 = vmatpush1.bf16.msra.mxu0 %v520
        %612 = vmatprep.subr.bf16.mxu0 0
        %613 = vmatpush1.bf16.msra.mxu0 %v521
        %614 = vmatprep.subr.bf16.mxu0 0
        %615 = vmatpush1.bf16.msra.mxu0 %v522
        %616 = vmatprep.subr.bf16.mxu0 0
        %617 = vmatpush1.bf16.msra.mxu0 %v523
        %618 = vmatprep.subr.bf16.mxu0 0
        %619 = vmatpush1.bf16.msra.mxu0 %v524
        %620 = vmatprep.subr.bf16.mxu0 0
        %621 = vmatpush1.bf16.msra.mxu0 %v525
        %622 = vmatprep.subr.bf16.mxu0 0
        %623 = vmatpush1.bf16.msra.mxu0 %v526
        %624 = vmatprep.subr.bf16.mxu0 0
        %625 = vmatpush1.bf16.msra.mxu0 %v527
        %626 = vmatprep.subr.bf16.mxu0 0
        %627 = vmatpush1.bf16.msra.mxu0 %v528
        %628 = vmatprep.subr.bf16.mxu0 0
        %629 = vmatpush1.bf16.msra.mxu0 %v529
        %630 = vmatprep.subr.bf16.mxu0 0
        %631 = vmatpush1.bf16.msra.mxu0 %v530
        %632 = vmatprep.subr.bf16.mxu0 0
        %633 = vmatpush1.bf16.msra.mxu0 %v531
        %634 = vmatprep.subr.bf16.mxu0 0
        %635 = vmatpush1.bf16.msra.mxu0 %v532
        %636 = vmatprep.subr.bf16.mxu0 0
        %637 = vmatpush1.bf16.msra.mxu0 %v533
        %638 = vmatprep.mubr.bf16.mxu0 %v369
        %639 = vmatmul.mubr.bf16.gmra.mrb[0].mxu0 %v368
        %v640 = vpop.f32.mrb[0].mxu0
        %v641 = vadd.f32 %v601, %v640
        %v642 = vpop.f32.mrb[0].mxu0
        %v643 = vpop.f32.mrb[0].mxu0
        %v644 = vpop.f32.mrb[0].mxu0
        %645 = vdwg.mxu0
        %s646 = scalar_lea.vmem %s236, 256 [#allocation5]
        %v647 = vld [vmem:[%s646] sm:$0xf]
        %v648 = vld [vmem:[%s646 + $0x4] sm:$0xf]
        %v649 = vld [vmem:[%s646 + $0x8] sm:$0xf]
        %v650 = vld [vmem:[%s646 + $0xc] sm:$0xf]
        %v651 = vld [vmem:[%s646 + $0x10] sm:$0xf]
        %v652 = vld [vmem:[%s646 + $0x14] sm:$0xf]
        %v653 = vld [vmem:[%s646 + $0x18] sm:$0xf]
        %v654 = vld [vmem:[%s646 + $0x1c] sm:$0xf]
        %v655 = vld [vmem:[%s646 + $0x20] sm:$0xf]
        %v656 = vld [vmem:[%s646 + $0x24] sm:$0xf]
        %v657 = vld [vmem:[%s646 + $0x28] sm:$0xf]
        %v658 = vld [vmem:[%s646 + $0x2c] sm:$0xf]
        %v659 = vld [vmem:[%s646 + $0x30] sm:$0xf]
        %v660 = vld [vmem:[%s646 + $0x34] sm:$0xf]
        %v661 = vld [vmem:[%s646 + $0x38] sm:$0xf]
        %v662 = vld [vmem:[%s646 + $0x3c] sm:$0xf]
        %v663 = vld [vmem:[%s646 + $0x40] sm:$0xf]
        %v664 = vld [vmem:[%s646 + $0x44] sm:$0xf]
        %v665 = vld [vmem:[%s646 + $0x48] sm:$0xf]
        %v666 = vld [vmem:[%s646 + $0x4c] sm:$0xf]
        %v667 = vld [vmem:[%s646 + $0x50] sm:$0xf]
        %v668 = vld [vmem:[%s646 + $0x54] sm:$0xf]
        %v669 = vld [vmem:[%s646 + $0x58] sm:$0xf]
        %v670 = vld [vmem:[%s646 + $0x5c] sm:$0xf]
        %v671 = vld [vmem:[%s646 + $0x60] sm:$0xf]
        %v672 = vld [vmem:[%s646 + $0x64] sm:$0xf]
        %v673 = vld [vmem:[%s646 + $0x68] sm:$0xf]
        %v674 = vld [vmem:[%s646 + $0x6c] sm:$0xf]
        %v675 = vld [vmem:[%s646 + $0x70] sm:$0xf]
        %v676 = vld [vmem:[%s646 + $0x74] sm:$0xf]
        %v677 = vld [vmem:[%s646 + $0x78] sm:$0xf]
        %v678 = vld [vmem:[%s646 + $0x7c] sm:$0xf]
        %v679 = vld [vmem:[%s646 + $0x80] sm:$0xf]
        %v680 = vld [vmem:[%s646 + $0x84] sm:$0xf]
        %v681 = vld [vmem:[%s646 + $0x88] sm:$0xf]
        %v682 = vld [vmem:[%s646 + $0x8c] sm:$0xf]
        %v683 = vld [vmem:[%s646 + $0x90] sm:$0xf]
        %v684 = vld [vmem:[%s646 + $0x94] sm:$0xf]
        %v685 = vld [vmem:[%s646 + $0x98] sm:$0xf]
        %v686 = vld [vmem:[%s646 + $0x9c] sm:$0xf]
        %v687 = vld [vmem:[%s646 + $0xa0] sm:$0xf]
        %v688 = vld [vmem:[%s646 + $0xa4] sm:$0xf]
        %v689 = vld [vmem:[%s646 + $0xa8] sm:$0xf]
        %v690 = vld [vmem:[%s646 + $0xac] sm:$0xf]
        %v691 = vld [vmem:[%s646 + $0xb0] sm:$0xf]
        %v692 = vld [vmem:[%s646 + $0xb4] sm:$0xf]
        %v693 = vld [vmem:[%s646 + $0xb8] sm:$0xf]
        %v694 = vld [vmem:[%s646 + $0xbc] sm:$0xf]
        %v695 = vld [vmem:[%s646 + $0xc0] sm:$0xf]
        %v696 = vld [vmem:[%s646 + $0xc4] sm:$0xf]
        %v697 = vld [vmem:[%s646 + $0xc8] sm:$0xf]
        %v698 = vld [vmem:[%s646 + $0xcc] sm:$0xf]
        %v699 = vld [vmem:[%s646 + $0xd0] sm:$0xf]
        %v700 = vld [vmem:[%s646 + $0xd4] sm:$0xf]
        %v701 = vld [vmem:[%s646 + $0xd8] sm:$0xf]
        %v702 = vld [vmem:[%s646 + $0xdc] sm:$0xf]
        %v703 = vld [vmem:[%s646 + $0xe0] sm:$0xf]
        %v704 = vld [vmem:[%s646 + $0xe4] sm:$0xf]
        %v705 = vld [vmem:[%s646 + $0xe8] sm:$0xf]
        %v706 = vld [vmem:[%s646 + $0xec] sm:$0xf]
        %v707 = vld [vmem:[%s646 + $0xf0] sm:$0xf]
        %v708 = vld [vmem:[%s646 + $0xf4] sm:$0xf]
        %v709 = vld [vmem:[%s646 + $0xf8] sm:$0xf]
        %v710 = vld [vmem:[%s646 + $0xfc] sm:$0xf]
        %v775 = vunpack.c.l.b16 %v647
        %v776 = vunpack.c.l.b16 %v648
        %v777 = vunpack.c.l.b16 %v649
        %v778 = vunpack.c.l.b16 %v650
        %v779 = vunpack.c.l.b16 %v651
        %v780 = vunpack.c.l.b16 %v652
        %v781 = vunpack.c.l.b16 %v653
        %v782 = vunpack.c.l.b16 %v654
        %v783 = vunpack.c.l.b16 %v655
        %v784 = vunpack.c.l.b16 %v656
        %v785 = vunpack.c.l.b16 %v657
        %v786 = vunpack.c.l.b16 %v658
        %v787 = vunpack.c.l.b16 %v659
        %v788 = vunpack.c.l.b16 %v660
        %v789 = vunpack.c.l.b16 %v661
        %v790 = vunpack.c.l.b16 %v662
        %v791 = vunpack.c.l.b16 %v663
        %v792 = vunpack.c.l.b16 %v664
        %v793 = vunpack.c.l.b16 %v665
        %v794 = vunpack.c.l.b16 %v666
        %v795 = vunpack.c.l.b16 %v667
        %v796 = vunpack.c.l.b16 %v668
        %v797 = vunpack.c.l.b16 %v669
        %v798 = vunpack.c.l.b16 %v670
        %v799 = vunpack.c.l.b16 %v671
        %v800 = vunpack.c.l.b16 %v672
        %v801 = vunpack.c.l.b16 %v673
        %v802 = vunpack.c.l.b16 %v674
        %v803 = vunpack.c.l.b16 %v675
        %v804 = vunpack.c.l.b16 %v676
        %v805 = vunpack.c.l.b16 %v677
        %v806 = vunpack.c.l.b16 %v678
        %v807 = vunpack.c.l.b16 %v679
        %v808 = vunpack.c.l.b16 %v680
        %v809 = vunpack.c.l.b16 %v681
        %v810 = vunpack.c.l.b16 %v682
        %v811 = vunpack.c.l.b16 %v683
        %v812 = vunpack.c.l.b16 %v684
        %v813 = vunpack.c.l.b16 %v685
        %v814 = vunpack.c.l.b16 %v686
        %v815 = vunpack.c.l.b16 %v687
        %v816 = vunpack.c.l.b16 %v688
        %v817 = vunpack.c.l.b16 %v689
        %v818 = vunpack.c.l.b16 %v690
        %v819 = vunpack.c.l.b16 %v691
        %v820 = vunpack.c.l.b16 %v692
        %v821 = vunpack.c.l.b16 %v693
        %v822 = vunpack.c.l.b16 %v694
        %v823 = vunpack.c.l.b16 %v695
        %v824 = vunpack.c.l.b16 %v696
        %v825 = vunpack.c.l.b16 %v697
        %v826 = vunpack.c.l.b16 %v698
        %v827 = vunpack.c.l.b16 %v699
        %v828 = vunpack.c.l.b16 %v700
        %v829 = vunpack.c.l.b16 %v701
        %v830 = vunpack.c.l.b16 %v702
        %v831 = vunpack.c.l.b16 %v703
        %v832 = vunpack.c.l.b16 %v704
        %v833 = vunpack.c.l.b16 %v705
        %v834 = vunpack.c.l.b16 %v706
        %v835 = vunpack.c.l.b16 %v707
        %v836 = vunpack.c.l.b16 %v708
        %v837 = vunpack.c.l.b16 %v709
        %v838 = vunpack.c.l.b16 %v710
        %v839 = vpack.c.b16 %v776, %v775
        %v840 = vpack.c.b16 %v778, %v777
        %v841 = vpack.c.b16 %v780, %v779
        %v842 = vpack.c.b16 %v782, %v781
        %v843 = vpack.c.b16 %v784, %v783
        %v844 = vpack.c.b16 %v786, %v785
        %v845 = vpack.c.b16 %v788, %v787
        %v846 = vpack.c.b16 %v790, %v789
        %v847 = vpack.c.b16 %v792, %v791
        %v848 = vpack.c.b16 %v794, %v793
        %v849 = vpack.c.b16 %v796, %v795
        %v850 = vpack.c.b16 %v798, %v797
        %v851 = vpack.c.b16 %v800, %v799
        %v852 = vpack.c.b16 %v802, %v801
        %v853 = vpack.c.b16 %v804, %v803
        %v854 = vpack.c.b16 %v806, %v805
        %v855 = vpack.c.b16 %v808, %v807
        %v856 = vpack.c.b16 %v810, %v809
        %v857 = vpack.c.b16 %v812, %v811
        %v858 = vpack.c.b16 %v814, %v813
        %v859 = vpack.c.b16 %v816, %v815
        %v860 = vpack.c.b16 %v818, %v817
        %v861 = vpack.c.b16 %v820, %v819
        %v862 = vpack.c.b16 %v822, %v821
        %v863 = vpack.c.b16 %v824, %v823
        %v864 = vpack.c.b16 %v826, %v825
        %v865 = vpack.c.b16 %v828, %v827
        %v866 = vpack.c.b16 %v830, %v829
        %v867 = vpack.c.b16 %v832, %v831
        %v868 = vpack.c.b16 %v834, %v833
        %v869 = vpack.c.b16 %v836, %v835
        %v870 = vpack.c.b16 %v838, %v837
        %903 = vmatprep.subr.bf16.mxu0 0
        %904 = vmatpush1.bf16.msra.mxu0 %v839
        %905 = vmatprep.subr.bf16.mxu0 0
        %906 = vmatpush1.bf16.msra.mxu0 %v840
        %907 = vmatprep.subr.bf16.mxu0 0
        %908 = vmatpush1.bf16.msra.mxu0 %v841
        %909 = vmatprep.subr.bf16.mxu0 0
        %910 = vmatpush1.bf16.msra.mxu0 %v842
        %911 = vmatprep.subr.bf16.mxu0 0
        %912 = vmatpush1.bf16.msra.mxu0 %v843
        %913 = vmatprep.subr.bf16.mxu0 0
        %914 = vmatpush1.bf16.msra.mxu0 %v844
        %915 = vmatprep.subr.bf16.mxu0 0
        %916 = vmatpush1.bf16.msra.mxu0 %v845
        %917 = vmatprep.subr.bf16.mxu0 0
        %918 = vmatpush1.bf16.msra.mxu0 %v846
        %919 = vmatprep.subr.bf16.mxu0 0
        %920 = vmatpush1.bf16.msra.mxu0 %v847
        %921 = vmatprep.subr.bf16.mxu0 0
        %922 = vmatpush1.bf16.msra.mxu0 %v848
        %923 = vmatprep.subr.bf16.mxu0 0
        %924 = vmatpush1.bf16.msra.mxu0 %v849
        %925 = vmatprep.subr.bf16.mxu0 0
        %926 = vmatpush1.bf16.msra.mxu0 %v850
        %927 = vmatprep.subr.bf16.mxu0 0
        %928 = vmatpush1.bf16.msra.mxu0 %v851
        %929 = vmatprep.subr.bf16.mxu0 0
        %930 = vmatpush1.bf16.msra.mxu0 %v852
        %931 = vmatprep.subr.bf16.mxu0 0
        %932 = vmatpush1.bf16.msra.mxu0 %v853
        %933 = vmatprep.subr.bf16.mxu0 0
        %934 = vmatpush1.bf16.msra.mxu0 %v854
        %935 = vmatprep.mubr.bf16.mxu0 %v367
        %936 = vmatmul.mubr.bf16.gmra.mrb[0].mxu0 %v360
        %v937 = vpop.f32.mrb[0].mxu0
        %v938 = vadd.f32 0.0, %v937
        %v939 = vpop.f32.mrb[0].mxu0
        %v940 = vpop.f32.mrb[0].mxu0
        %v941 = vpop.f32.mrb[0].mxu0
        %942 = vdwg.mxu0
        %943 = vmatprep.subr.bf16.mxu0 0
        %944 = vmatpush1.bf16.msra.mxu0 %v855
        %945 = vmatprep.subr.bf16.mxu0 0
        %946 = vmatpush1.bf16.msra.mxu0 %v856
        %947 = vmatprep.subr.bf16.mxu0 0
        %948 = vmatpush1.bf16.msra.mxu0 %v857
        %949 = vmatprep.subr.bf16.mxu0 0
        %950 = vmatpush1.bf16.msra.mxu0 %v858
        %951 = vmatprep.subr.bf16.mxu0 0
        %952 = vmatpush1.bf16.msra.mxu0 %v859
        %953 = vmatprep.subr.bf16.mxu0 0
        %954 = vmatpush1.bf16.msra.mxu0 %v860
        %955 = vmatprep.subr.bf16.mxu0 0
        %956 = vmatpush1.bf16.msra.mxu0 %v861
        %957 = vmatprep.subr.bf16.mxu0 0
        %958 = vmatpush1.bf16.msra.mxu0 %v862
        %959 = vmatprep.subr.bf16.mxu0 0
        %960 = vmatpush1.bf16.msra.mxu0 %v863
        %961 = vmatprep.subr.bf16.mxu0 0
        %962 = vmatpush1.bf16.msra.mxu0 %v864
        %963 = vmatprep.subr.bf16.mxu0 0
        %964 = vmatpush1.bf16.msra.mxu0 %v865
        %965 = vmatprep.subr.bf16.mxu0 0
        %966 = vmatpush1.bf16.msra.mxu0 %v866
        %967 = vmatprep.subr.bf16.mxu0 0
        %968 = vmatpush1.bf16.msra.mxu0 %v867
        %969 = vmatprep.subr.bf16.mxu0 0
        %970 = vmatpush1.bf16.msra.mxu0 %v868
        %971 = vmatprep.subr.bf16.mxu0 0
        %972 = vmatpush1.bf16.msra.mxu0 %v869
        %973 = vmatprep.subr.bf16.mxu0 0
        %974 = vmatpush1.bf16.msra.mxu0 %v870
        %975 = vmatprep.mubr.bf16.mxu0 %v369
        %976 = vmatmul.mubr.bf16.gmra.mrb[0].mxu0 %v368
        %v977 = vpop.f32.mrb[0].mxu0
        %v978 = vadd.f32 %v938, %v977
        %v979 = vpop.f32.mrb[0].mxu0
        %v980 = vpop.f32.mrb[0].mxu0
        %v981 = vpop.f32.mrb[0].mxu0
        %982 = vdwg.mxu0
        %s983 = scalar_lea.vmem %s236, 512 [#allocation5]
        %v984 = vld [vmem:[%s983] sm:$0xf]
        %v985 = vld [vmem:[%s983 + $0x4] sm:$0xf]
        %v986 = vld [vmem:[%s983 + $0x8] sm:$0xf]
        %v987 = vld [vmem:[%s983 + $0xc] sm:$0xf]
        %v988 = vld [vmem:[%s983 + $0x10] sm:$0xf]
        %v989 = vld [vmem:[%s983 + $0x14] sm:$0xf]
        %v990 = vld [vmem:[%s983 + $0x18] sm:$0xf]
        %v991 = vld [vmem:[%s983 + $0x1c] sm:$0xf]
        %v992 = vld [vmem:[%s983 + $0x20] sm:$0xf]
        %v993 = vld [vmem:[%s983 + $0x24] sm:$0xf]
        %v994 = vld [vmem:[%s983 + $0x28] sm:$0xf]
        %v995 = vld [vmem:[%s983 + $0x2c] sm:$0xf]
        %v996 = vld [vmem:[%s983 + $0x30] sm:$0xf]
        %v997 = vld [vmem:[%s983 + $0x34] sm:$0xf]
        %v998 = vld [vmem:[%s983 + $0x38] sm:$0xf]
        %v999 = vld [vmem:[%s983 + $0x3c] sm:$0xf]
        %v1000 = vld [vmem:[%s983 + $0x40] sm:$0xf]
        %v1001 = vld [vmem:[%s983 + $0x44] sm:$0xf]
        %v1002 = vld [vmem:[%s983 + $0x48] sm:$0xf]
        %v1003 = vld [vmem:[%s983 + $0x4c] sm:$0xf]
        %v1004 = vld [vmem:[%s983 + $0x50] sm:$0xf]
        %v1005 = vld [vmem:[%s983 + $0x54] sm:$0xf]
        %v1006 = vld [vmem:[%s983 + $0x58] sm:$0xf]
        %v1007 = vld [vmem:[%s983 + $0x5c] sm:$0xf]
        %v1008 = vld [vmem:[%s983 + $0x60] sm:$0xf]
        %v1009 = vld [vmem:[%s983 + $0x64] sm:$0xf]
        %v1010 = vld [vmem:[%s983 + $0x68] sm:$0xf]
        %v1011 = vld [vmem:[%s983 + $0x6c] sm:$0xf]
        %v1012 = vld [vmem:[%s983 + $0x70] sm:$0xf]
        %v1013 = vld [vmem:[%s983 + $0x74] sm:$0xf]
        %v1014 = vld [vmem:[%s983 + $0x78] sm:$0xf]
        %v1015 = vld [vmem:[%s983 + $0x7c] sm:$0xf]
        %v1016 = vld [vmem:[%s983 + $0x80] sm:$0xf]
        %v1017 = vld [vmem:[%s983 + $0x84] sm:$0xf]
        %v1018 = vld [vmem:[%s983 + $0x88] sm:$0xf]
        %v1019 = vld [vmem:[%s983 + $0x8c] sm:$0xf]
        %v1020 = vld [vmem:[%s983 + $0x90] sm:$0xf]
        %v1021 = vld [vmem:[%s983 + $0x94] sm:$0xf]
        %v1022 = vld [vmem:[%s983 + $0x98] sm:$0xf]
        %v1023 = vld [vmem:[%s983 + $0x9c] sm:$0xf]
        %v1024 = vld [vmem:[%s983 + $0xa0] sm:$0xf]
        %v1025 = vld [vmem:[%s983 + $0xa4] sm:$0xf]
        %v1026 = vld [vmem:[%s983 + $0xa8] sm:$0xf]
        %v1027 = vld [vmem:[%s983 + $0xac] sm:$0xf]
        %v1028 = vld [vmem:[%s983 + $0xb0] sm:$0xf]
        %v1029 = vld [vmem:[%s983 + $0xb4] sm:$0xf]
        %v1030 = vld [vmem:[%s983 + $0xb8] sm:$0xf]
        %v1031 = vld [vmem:[%s983 + $0xbc] sm:$0xf]
        %v1032 = vld [vmem:[%s983 + $0xc0] sm:$0xf]
        %v1033 = vld [vmem:[%s983 + $0xc4] sm:$0xf]
        %v1034 = vld [vmem:[%s983 + $0xc8] sm:$0xf]
        %v1035 = vld [vmem:[%s983 + $0xcc] sm:$0xf]
        %v1036 = vld [vmem:[%s983 + $0xd0] sm:$0xf]
        %v1037 = vld [vmem:[%s983 + $0xd4] sm:$0xf]
        %v1038 = vld [vmem:[%s983 + $0xd8] sm:$0xf]
        %v1039 = vld [vmem:[%s983 + $0xdc] sm:$0xf]
        %v1040 = vld [vmem:[%s983 + $0xe0] sm:$0xf]
        %v1041 = vld [vmem:[%s983 + $0xe4] sm:$0xf]
        %v1042 = vld [vmem:[%s983 + $0xe8] sm:$0xf]
        %v1043 = vld [vmem:[%s983 + $0xec] sm:$0xf]
        %v1044 = vld [vmem:[%s983 + $0xf0] sm:$0xf]
        %v1045 = vld [vmem:[%s983 + $0xf4] sm:$0xf]
        %v1046 = vld [vmem:[%s983 + $0xf8] sm:$0xf]
        %v1047 = vld [vmem:[%s983 + $0xfc] sm:$0xf]
        %v1112 = vunpack.c.l.b16 %v984
        %v1113 = vunpack.c.l.b16 %v985
        %v1114 = vunpack.c.l.b16 %v986
        %v1115 = vunpack.c.l.b16 %v987
        %v1116 = vunpack.c.l.b16 %v988
        %v1117 = vunpack.c.l.b16 %v989
        %v1118 = vunpack.c.l.b16 %v990
        %v1119 = vunpack.c.l.b16 %v991
        %v1120 = vunpack.c.l.b16 %v992
        %v1121 = vunpack.c.l.b16 %v993
        %v1122 = vunpack.c.l.b16 %v994
        %v1123 = vunpack.c.l.b16 %v995
        %v1124 = vunpack.c.l.b16 %v996
        %v1125 = vunpack.c.l.b16 %v997
        %v1126 = vunpack.c.l.b16 %v998
        %v1127 = vunpack.c.l.b16 %v999
        %v1128 = vunpack.c.l.b16 %v1000
        %v1129 = vunpack.c.l.b16 %v1001
        %v1130 = vunpack.c.l.b16 %v1002
        %v1131 = vunpack.c.l.b16 %v1003
        %v1132 = vunpack.c.l.b16 %v1004
        %v1133 = vunpack.c.l.b16 %v1005
        %v1134 = vunpack.c.l.b16 %v1006
        %v1135 = vunpack.c.l.b16 %v1007
        %v1136 = vunpack.c.l.b16 %v1008
        %v1137 = vunpack.c.l.b16 %v1009
        %v1138 = vunpack.c.l.b16 %v1010
        %v1139 = vunpack.c.l.b16 %v1011
        %v1140 = vunpack.c.l.b16 %v1012
        %v1141 = vunpack.c.l.b16 %v1013
        %v1142 = vunpack.c.l.b16 %v1014
        %v1143 = vunpack.c.l.b16 %v1015
        %v1144 = vunpack.c.l.b16 %v1016
        %v1145 = vunpack.c.l.b16 %v1017
        %v1146 = vunpack.c.l.b16 %v1018
        %v1147 = vunpack.c.l.b16 %v1019
        %v1148 = vunpack.c.l.b16 %v1020
        %v1149 = vunpack.c.l.b16 %v1021
        %v1150 = vunpack.c.l.b16 %v1022
        %v1151 = vunpack.c.l.b16 %v1023
        %v1152 = vunpack.c.l.b16 %v1024
        %v1153 = vunpack.c.l.b16 %v1025
        %v1154 = vunpack.c.l.b16 %v1026
        %v1155 = vunpack.c.l.b16 %v1027
        %v1156 = vunpack.c.l.b16 %v1028
        %v1157 = vunpack.c.l.b16 %v1029
        %v1158 = vunpack.c.l.b16 %v1030
        %v1159 = vunpack.c.l.b16 %v1031
        %v1160 = vunpack.c.l.b16 %v1032
        %v1161 = vunpack.c.l.b16 %v1033
        %v1162 = vunpack.c.l.b16 %v1034
        %v1163 = vunpack.c.l.b16 %v1035
        %v1164 = vunpack.c.l.b16 %v1036
        %v1165 = vunpack.c.l.b16 %v1037
        %v1166 = vunpack.c.l.b16 %v1038
        %v1167 = vunpack.c.l.b16 %v1039
        %v1168 = vunpack.c.l.b16 %v1040
        %v1169 = vunpack.c.l.b16 %v1041
        %v1170 = vunpack.c.l.b16 %v1042
        %v1171 = vunpack.c.l.b16 %v1043
        %v1172 = vunpack.c.l.b16 %v1044
        %v1173 = vunpack.c.l.b16 %v1045
        %v1174 = vunpack.c.l.b16 %v1046
        %v1175 = vunpack.c.l.b16 %v1047
        %v1176 = vpack.c.b16 %v1113, %v1112
        %v1177 = vpack.c.b16 %v1115, %v1114
        %v1178 = vpack.c.b16 %v1117, %v1116
        %v1179 = vpack.c.b16 %v1119, %v1118
        %v1180 = vpack.c.b16 %v1121, %v1120
        %v1181 = vpack.c.b16 %v1123, %v1122
        %v1182 = vpack.c.b16 %v1125, %v1124
        %v1183 = vpack.c.b16 %v1127, %v1126
        %v1184 = vpack.c.b16 %v1129, %v1128
        %v1185 = vpack.c.b16 %v1131, %v1130
        %v1186 = vpack.c.b16 %v1133, %v1132
        %v1187 = vpack.c.b16 %v1135, %v1134
        %v1188 = vpack.c.b16 %v1137, %v1136
        %v1189 = vpack.c.b16 %v1139, %v1138
        %v1190 = vpack.c.b16 %v1141, %v1140
        %v1191 = vpack.c.b16 %v1143, %v1142
        %v1192 = vpack.c.b16 %v1145, %v1144
        %v1193 = vpack.c.b16 %v1147, %v1146
        %v1194 = vpack.c.b16 %v1149, %v1148
        %v1195 = vpack.c.b16 %v1151, %v1150
        %v1196 = vpack.c.b16 %v1153, %v1152
        %v1197 = vpack.c.b16 %v1155, %v1154
        %v1198 = vpack.c.b16 %v1157, %v1156
        %v1199 = vpack.c.b16 %v1159, %v1158
        %v1200 = vpack.c.b16 %v1161, %v1160
        %v1201 = vpack.c.b16 %v1163, %v1162
        %v1202 = vpack.c.b16 %v1165, %v1164
        %v1203 = vpack.c.b16 %v1167, %v1166
        %v1204 = vpack.c.b16 %v1169, %v1168
        %v1205 = vpack.c.b16 %v1171, %v1170
        %v1206 = vpack.c.b16 %v1173, %v1172
        %v1207 = vpack.c.b16 %v1175, %v1174
        %1240 = vmatprep.subr.bf16.mxu0 0
        %1241 = vmatpush1.bf16.msra.mxu0 %v1176
        %1242 = vmatprep.subr.bf16.mxu0 0
        %1243 = vmatpush1.bf16.msra.mxu0 %v1177
        %1244 = vmatprep.subr.bf16.mxu0 0
        %1245 = vmatpush1.bf16.msra.mxu0 %v1178
        %1246 = vmatprep.subr.bf16.mxu0 0
        %1247 = vmatpush1.bf16.msra.mxu0 %v1179
        %1248 = vmatprep.subr.bf16.mxu0 0
        %1249 = vmatpush1.bf16.msra.mxu0 %v1180
        %1250 = vmatprep.subr.bf16.mxu0 0
        %1251 = vmatpush1.bf16.msra.mxu0 %v1181
        %1252 = vmatprep.subr.bf16.mxu0 0
        %1253 = vmatpush1.bf16.msra.mxu0 %v1182
        %1254 = vmatprep.subr.bf16.mxu0 0
        %1255 = vmatpush1.bf16.msra.mxu0 %v1183
        %1256 = vmatprep.subr.bf16.mxu0 0
        %1257 = vmatpush1.bf16.msra.mxu0 %v1184
        %1258 = vmatprep.subr.bf16.mxu0 0
        %1259 = vmatpush1.bf16.msra.mxu0 %v1185
        %1260 = vmatprep.subr.bf16.mxu0 0
        %1261 = vmatpush1.bf16.msra.mxu0 %v1186
        %1262 = vmatprep.subr.bf16.mxu0 0
        %1263 = vmatpush1.bf16.msra.mxu0 %v1187
        %1264 = vmatprep.subr.bf16.mxu0 0
        %1265 = vmatpush1.bf16.msra.mxu0 %v1188
        %1266 = vmatprep.subr.bf16.mxu0 0
        %1267 = vmatpush1.bf16.msra.mxu0 %v1189
        %1268 = vmatprep.subr.bf16.mxu0 0
        %1269 = vmatpush1.bf16.msra.mxu0 %v1190
        %1270 = vmatprep.subr.bf16.mxu0 0
        %1271 = vmatpush1.bf16.msra.mxu0 %v1191
        %1272 = vmatprep.mubr.bf16.mxu0 %v367
        %1273 = vmatmul.mubr.bf16.gmra.mrb[0].mxu0 %v360
        %v1274 = vpop.f32.mrb[0].mxu0
        %v1275 = vadd.f32 0.0, %v1274
        %v1276 = vpop.f32.mrb[0].mxu0
        %v1277 = vpop.f32.mrb[0].mxu0
        %v1278 = vpop.f32.mrb[0].mxu0
        %1279 = vdwg.mxu0
        %1280 = vmatprep.subr.bf16.mxu0 0
        %1281 = vmatpush1.bf16.msra.mxu0 %v1192
        %1282 = vmatprep.subr.bf16.mxu0 0
        %1283 = vmatpush1.bf16.msra.mxu0 %v1193
        %1284 = vmatprep.subr.bf16.mxu0 0
        %1285 = vmatpush1.bf16.msra.mxu0 %v1194
        %1286 = vmatprep.subr.bf16.mxu0 0
        %1287 = vmatpush1.bf16.msra.mxu0 %v1195
        %1288 = vmatprep.subr.bf16.mxu0 0
        %1289 = vmatpush1.bf16.msra.mxu0 %v1196
        %1290 = vmatprep.subr.bf16.mxu0 0
        %1291 = vmatpush1.bf16.msra.mxu0 %v1197
        %1292 = vmatprep.subr.bf16.mxu0 0
        %1293 = vmatpush1.bf16.msra.mxu0 %v1198
        %1294 = vmatprep.subr.bf16.mxu0 0
        %1295 = vmatpush1.bf16.msra.mxu0 %v1199
        %1296 = vmatprep.subr.bf16.mxu0 0
        %1297 = vmatpush1.bf16.msra.mxu0 %v1200
        %1298 = vmatprep.subr.bf16.mxu0 0
        %1299 = vmatpush1.bf16.msra.mxu0 %v1201
        %1300 = vmatprep.subr.bf16.mxu0 0
        %1301 = vmatpush1.bf16.msra.mxu0 %v1202
        %1302 = vmatprep.subr.bf16.mxu0 0
        %1303 = vmatpush1.bf16.msra.mxu0 %v1203
        %1304 = vmatprep.subr.bf16.mxu0 0
        %1305 = vmatpush1.bf16.msra.mxu0 %v1204
        %1306 = vmatprep.subr.bf16.mxu0 0
        %1307 = vmatpush1.bf16.msra.mxu0 %v1205
        %1308 = vmatprep.subr.bf16.mxu0 0
        %1309 = vmatpush1.bf16.msra.mxu0 %v1206
        %1310 = vmatprep.subr.bf16.mxu0 0
        %1311 = vmatpush1.bf16.msra.mxu0 %v1207
        %1312 = vmatprep.mubr.bf16.mxu0 %v369
        %1313 = vmatmul.mubr.bf16.gmra.mrb[0].mxu0 %v368
        %v1314 = vpop.f32.mrb[0].mxu0
        %v1315 = vadd.f32 %v1275, %v1314
        %v1316 = vpop.f32.mrb[0].mxu0
        %v1317 = vpop.f32.mrb[0].mxu0
        %v1318 = vpop.f32.mrb[0].mxu0
        %1319 = vdwg.mxu0
        %v1320 = vld [vmem:[#allocation8] sm:$0xff]
        %v1321 = vld [vmem:[#allocation8 + $0x8] sm:$0xff]
        %v1322 = vld [vmem:[#allocation8 + $0x10] sm:$0xff]
        %v1323 = vld [vmem:[%s245] sm:$0xff]
        %v1324 = vld [vmem:[%s245 + $0x8] sm:$0xff]
        %v1325 = vld [vmem:[%s245 + $0x10] sm:$0xff]
        %v1326 = vld [vmem:[%s245 + $0x18] sm:$0xff]
        %v1327 = vld [vmem:[%s245 + $0x20] sm:$0xff]
        %v1328 = vld [vmem:[%s245 + $0x28] sm:$0xff]
        %v1329 = vld [vmem:[%s245 + $0x30] sm:$0xff]
        %v1330 = vld [vmem:[%s245 + $0x38] sm:$0xff]
        %vm1331 = vcmask 523264
        %v1333 = vsel %vm1331, %v1320, 0
        %v1336 = vsel %vm1331, %v1321, 0
        %v1339 = vsel %vm1331, %v1322, 0
        %1341 = vmatprep.subr.mxu0 0.0
        %1342 = vmatpush1.msra.mxu0 %v1323
        %1343 = vmatprep.subr.mxu0 0.0
        %1344 = vmatpush1.msra.mxu0 %v1324
        %1345 = vmatprep.subr.mxu0 0.0
        %1346 = vmatpush1.msra.mxu0 %v1325
        %1347 = vmatprep.subr.mxu0 0.0
        %1348 = vmatpush1.msra.mxu0 %v1326
        %1349 = vmatprep.subr.mxu0 0.0
        %1350 = vmatpush1.msra.mxu0 %v1327
        %1351 = vmatprep.subr.mxu0 0.0
        %1352 = vmatpush1.msra.mxu0 %v1328
        %1353 = vmatprep.subr.mxu0 0.0
        %1354 = vmatpush1.msra.mxu0 %v1329
        %1355 = vmatprep.subr.mxu0 0.0
        %1356 = vmatpush1.msra.mxu0 %v1330
        %1357 = vmatprep.subr.mxu0 0.0
        %1358 = vmatpush1.msra.mxu0 0.0
        %1359 = vmatprep.subr.mxu0 0.0
        %1360 = vmatpush1.msra.mxu0 0.0
        %1361 = vmatprep.subr.mxu0 0.0
        %1362 = vmatpush1.msra.mxu0 0.0
        %1363 = vmatprep.subr.mxu0 0.0
        %1364 = vmatpush1.msra.mxu0 0.0
        %1365 = vmatprep.subr.mxu0 0.0
        %1366 = vmatpush1.msra.mxu0 0.0
        %1367 = vmatprep.subr.mxu0 0.0
        %1368 = vmatpush1.msra.mxu0 0.0
        %1369 = vmatprep.subr.mxu0 0.0
        %1370 = vmatpush1.msra.mxu0 0.0
        %1371 = vmatprep.subr.mxu0 0.0
        %1372 = vmatpush1.msra.mxu0 0.0
        %1373 = vmatprep.subr.mxu0 0.0
        %1374 = vmatpush1.msra.mxu0 0.0
        %1375 = vmatprep.subr.mxu0 0.0
        %1376 = vmatpush1.msra.mxu0 0.0
        %1377 = vmatprep.subr.mxu0 0.0
        %1378 = vmatpush1.msra.mxu0 0.0
        %1379 = vmatprep.subr.mxu0 0.0
        %1380 = vmatpush1.msra.mxu0 0.0
        %1381 = vmatprep.subr.mxu0 0.0
        %1382 = vmatpush1.msra.mxu0 0.0
        %1383 = vmatprep.subr.mxu0 0.0
        %1384 = vmatpush1.msra.mxu0 0.0
        %1385 = vmatprep.subr.mxu0 0.0
        %1386 = vmatpush1.msra.mxu0 0.0
        %1387 = vmatprep.subr.mxu0 0.0
        %1388 = vmatpush1.msra.mxu0 0.0
        %1389 = vmatprep.subr.mxu0 0.0
        %1390 = vmatpush1.msra.mxu0 0.0
        %1391 = vmatprep.subr.mxu0 0.0
        %1392 = vmatpush1.msra.mxu0 0.0
        %1393 = vmatprep.subr.mxu0 0.0
        %1394 = vmatpush1.msra.mxu0 0.0
        %1395 = vmatprep.subr.mxu0 0.0
        %1396 = vmatpush1.msra.mxu0 0.0
        %1397 = vmatprep.subr.mxu0 0.0
        %1398 = vmatpush1.msra.mxu0 0.0
        %1399 = vmatprep.subr.mxu0 0.0
        %1400 = vmatpush1.msra.mxu0 0.0
        %1401 = vmatprep.subr.mxu0 0.0
        %1402 = vmatpush1.msra.mxu0 0.0
        %1403 = vmatprep.subr.mxu0 0.0
        %1404 = vmatpush1.msra.mxu0 0.0
        %1405 = vmatprep.mubr.f32.mxu0 0.0
        %1406 = vmatmul.mubr.f32.gmra.mrb[0].mxu0 %v1333
        %v1407 = vpop.f32.mrb[0].mxu0
        %v1408 = vadd.f32 0.0, %v1407
        %v1409 = vpop.f32.mrb[0].mxu0
        %1410 = vmatprep.mubr.f32.mxu0 0.0
        %1411 = vmatmul.mubr.f32.gmra.mrb[0].mxu0 %v1336
        %v1412 = vpop.f32.mrb[0].mxu0
        %v1413 = vadd.f32 0.0, %v1412
        %v1414 = vpop.f32.mrb[0].mxu0
        %1415 = vmatprep.mubr.f32.mxu0 0.0
        %1416 = vmatmul.mubr.f32.gmra.mrb[0].mxu0 %v1339
        %v1417 = vpop.f32.mrb[0].mxu0
        %v1418 = vadd.f32 0.0, %v1417
        %v1419 = vpop.f32.mrb[0].mxu0
        %1420 = vdwg.mxu0
        %v1421 = vmul.f32 %v1408, %v641
        %v1423 = vrot.slane %v978, 2
        %v1425 = vmul.f32 %v1408, %v1423
        %v1427 = vrot.slane %v1425, 6
        %v1429 = vadd.f32 %v1421, %v1427
        %v1431 = vrot.slane %v1315, 4
        %v1433 = vmul.f32 %v1413, %v1431
        %v1435 = vrot.slane %v1433, 4
        %v1437 = vadd.f32 %v1429, %v1435
        %v1439 = vrot.slane %v1418, 2
        %v1441 = vadd.f32 %v1437, %v1439
        %1442 = vst [vmem:[%s278] sm:$0x3] %v1441
        %v1444 = vrot.slane %v641, 6
        %v1446 = vmul.f32 %v1408, %v1444
        %v1447 = vmul.f32 %v1413, %v978
        %v1449 = vrot.slane %v1447, 6
        %v1451 = vadd.f32 %v1446, %v1449
        %v1452 = vrot.slane %v1315, 2
        %v1454 = vmul.f32 %v1413, %v1452
        %v1456 = vrot.slane %v1454, 4
        %v1458 = vadd.f32 %v1451, %v1456
        %v1459 = vadd.f32 %v1458, %v1439
        %s1460 = scalar_lea.vmem %s278, 2 [#allocation10]
        %1461 = vst [vmem:[%s1460 - $0x2] sm:$0xc] %v1459
        %v1462 = vrot.slane %v641, 4
        %v1464 = vmul.f32 %v1408, %v1462
        %v1465 = vrot.slane %v978, 6
        %v1467 = vmul.f32 %v1413, %v1465
        %v1469 = vrot.slane %v1467, 6
        %v1471 = vadd.f32 %v1464, %v1469
        %v1472 = vmul.f32 %v1418, %v1315
        %v1474 = vrot.slane %v1472, 4
        %v1476 = vadd.f32 %v1471, %v1474
        %v1477 = vadd.f32 %v1476, %v1439
        %s1478 = scalar_lea.vmem %s278, 4 [#allocation10]
        %1479 = vst [vmem:[%s1478 - $0x4] sm:$0x30] %v1477
        %s1480 = sand.u32 %s125, 1
        %s1481 = scalar_lea.sflag [#allocation4], %s1480
        %s1482 = sand.u32 %s125, 1
        %s1483 = smul.addr %s1482, 6
        %s1484 = scalar_lea.vmem [#allocation10], %s1483
        // Predicated region
        $region53: #{tpu_custom_call.1} parent=35 // pred_check
          %p1485 = pneg %p135
        $region54: #{tpu_custom_call.1} parent=35 // pred_check_branch
          %1487 = sbr.rel (%p1485) target = $region56
        $region55: #{tpu_custom_call.1} parent=35 // pred_region
          %s1489 = ssub.s32 96, 96
          %1490 = vsyncadd %s1481, %s1489
          %s1491 = smul.addr %s23, 32
          %s1492 = scalar_lea.hbm %s4, %s1491
          %s1493 = sshll.u32 %s1484, 4
          %s1494 = int_to_ptr.vmem [resolvable:$true] %s1493
          %1499 = dma.vmem_to_hbm [thread:$0]  %s1494, 96, %s1492, %s1481, 32, 128, 2
        $region56: #{tpu_custom_call.1} parent=35 // pred_fallthru
          _
      $region36: #{tpu_custom_call.1} parent=5 // pred_fallthru
        _
      %p1500 = scmp.le.s32.totalorder 2, %s18
      // Predicated region
      $region57: #{tpu_custom_call.1} parent=5 // pred_check
        %p1501 = pneg %p1500
      $region58: #{tpu_custom_call.1} parent=5 // pred_check_branch
        %1503 = sbr.rel (%p1501) target = $region60
      $region59: #{tpu_custom_call.1} parent=5 // pred_region
        %s1504 = ssub.s32 %s18, 2
        // Predicated region
        $region61: #{tpu_custom_call.1} parent=59 // pred_check
          %p1505 = pneg %p141
        $region62: #{tpu_custom_call.1} parent=59 // pred_check_branch
          %1507 = sbr.rel (%p1505) target = $region64
        $region63: #{tpu_custom_call.1} parent=59 // pred_region
          %s1508 = sand.u32 %s126, 1
          %s1509 = scalar_lea.sflag [#allocation4], %s1508
          %s1510 = sand.u32 %s126, 1
          %s1511 = smul.addr %s1510, 6
          %s1512 = scalar_lea.vmem [#allocation10], %s1511
          %1513 = dma.done %s1509, 96
        $region64: #{tpu_custom_call.1} parent=59 // pred_fallthru
          _
      $region60: #{tpu_custom_call.1} parent=5 // pred_fallthru
        _
    $region6: #{tpu_custom_call.1} parent=1 // loop_footer
      %s22 = sadd.s32 1, %s18
    $region7: #{tpu_custom_call.1} parent=1 // loop_footer_branch
      %17 = sbr.rel target = $region3
    $region8: #{tpu_custom_call.1} parent=1 // loop_exit
      _
    %1514 = vsyncpa [#allocation3], 1
    %s1515 = scalar_lea.sflag [#allocation3], 1
    %1516 = vsyncpa %s1515, 1
    %1517 = vsyncpa [#allocation6], 1
    %s1518 = scalar_lea.sflag [#allocation6], 1
    %1519 = vsyncpa %s1518, 1
    %1520 = vsyncpa [#allocation9], 1
    %1521 = vsyncpa [#allocation4], 1
    %s1522 = scalar_lea.sflag [#allocation4], 1
    %1523 = vsyncpa %s1522, 1

</llo_original>
